<compile_context>
chip_gen: v7x
topology: tpu7x:2x2x1
jax: 0.10.0
libtpu: 0.0.40
codegen_flags: <defaults>
</compile_context>

<pallas_src>
import functools

import jax
import jax.numpy as jnp
from jax.experimental import pallas as pl
from jax.experimental.pallas import tpu as pltpu

PAD_IDX = 1
LN_EPS = 1e-5            # torch.nn.LayerNorm default eps
INV_SQRT2 = 0.7071067811865476
NEG_BIG = -1e30          # finite "minus infinity" for key-padding bias


# ----------------------------- shared math helpers (pure jnp) -----------------------------

def _layer_norm(x, g, b):
    mu = jnp.mean(x, axis=-1, keepdims=True)
    xc = x - mu
    var = jnp.mean(xc * xc, axis=-1, keepdims=True)
    return xc * jax.lax.rsqrt(var + LN_EPS) * g + b


def _gelu_tanh(x):
    # tanh-form GELU: the transcendental lands on the EUP slot instead of burning VALU
    # ops on the erf rational polynomial (binding slot on v6e/v7x).
    c = 0.7978845608028654  # sqrt(2/pi)
    return 0.5 * x * (1.0 + jnp.tanh(c * (x + 0.044715 * x * x * x)))


# ----------------------------------- the kernel --------------------------------------

def encoder_kernel(x0_ref, padneg_ref,
                   wqkv_ref, bqkv_ref, wo_ref, bo_ref, ln1g_ref, ln1b_ref,
                   w1_ref, b1_ref, w2_ref, b2_ref, ln2g_ref, ln2b_ref,
                   out_ref, ctx_sc, *, num_heads):
    # Grid: axis 0 = batch ("parallel", megacore), axis 1 = layer ("arbitrary", inner).
    # x0_ref:     (1, T, C)  f32   layer-0 activation (post emb-LN, pads zeroed); aliased
    #                              with the output HBM buffer, read only at l == 0.
    # padneg_ref: (1, 1, T)  f32   additive key bias: -1e30 at pads, 0 elsewhere.
    # wqkv_ref:   (1, C, 3C) bf16  fused Q|K|V weights (1/sqrt(Dh) folded into Q part).
    # bqkv_ref:   (1, 1, 3C) f32   fused Q|K|V bias.
    # wo/w1/w2:   bf16 per-layer weight blocks; LN params / biases f32.
    # out_ref:    (1, T, C)  f32   carried activation, resident across the layer axis.
    # ctx_sc:     (T, C)     bf16  VMEM scratch holding concatenated per-head contexts.
    l = pl.program_id(1)

    # ---- layer 0: seed the carry from the wrapper-computed embedding activation ----
    @pl.when(l == 0)
    def _():
        out_ref[...] = x0_ref[...]

    t, c = out_ref.shape[1], out_ref.shape[2]
    dh = c // num_heads

    x = out_ref[0]                                      # (T, C) f32 carried activation
    xb = x.astype(jnp.bfloat16)
    bias = padneg_ref[0]                                # (1, T) additive key-pad bias

    # ---- fused Q/K/V projection: one (T, C) x (C, 3C) GEMM (scaling pre-folded) ----
    qkv = jnp.dot(xb, wqkv_ref[0], preferred_element_type=jnp.float32) + bqkv_ref[0]
    qb = qkv[:, 0:c].astype(jnp.bfloat16)
    kb = qkv[:, c:2 * c].astype(jnp.bfloat16)
    vb = qkv[:, 2 * c:3 * c].astype(jnp.bfloat16)

    # ---- per-head score / softmax / context on small (T, T) blocks ----
    for h in range(num_heads):
        c0 = h * dh
        qh = qb[:, c0:c0 + dh]
        kh = kb[:, c0:c0 + dh]
        vh = vb[:, c0:c0 + dh]
        s = jax.lax.dot_general(qh, kh, (((1,), (1,)), ((), ())),
                                preferred_element_type=jnp.float32)     # (T, T)
        s = s + bias
        s = s - jnp.max(s, axis=-1, keepdims=True)
        e = jnp.exp(s)
        p_attn = e * pl.reciprocal(jnp.sum(e, axis=-1, keepdims=True), approx=True)
        ctx = jnp.dot(p_attn.astype(jnp.bfloat16), vh,
                      preferred_element_type=jnp.float32)               # (T, Dh)
        ctx_sc[:, c0:c0 + dh] = ctx.astype(jnp.bfloat16)

    # ---- fused output projection over all heads: one (T, C) x (C, C) GEMM ----
    attn = jnp.dot(ctx_sc[...], wo_ref[0],
                   preferred_element_type=jnp.float32) + bo_ref[0]
    y = _layer_norm(x + attn, ln1g_ref[0], ln1b_ref[0])

    # ---- MLP (tanh GELU) ----
    hid = _gelu_tanh(
        jnp.dot(y.astype(jnp.bfloat16), w1_ref[0],
                preferred_element_type=jnp.float32) + b1_ref[0])
    z = jnp.dot(hid.astype(jnp.bfloat16), w2_ref[0],
                preferred_element_type=jnp.float32) + b2_ref[0] + y
    out_ref[0] = _layer_norm(z, ln2g_ref[0], ln2b_ref[0])


# --------------------------------- pallas wrapper ---------------------------------

def prepare_encoder_params(params, num_heads):
    """One-time packing: fuse QKV, fold the 1/sqrt(Dh) scaling, cast weights to bf16."""
    C = params['wq'].shape[-1]
    scale = (C // num_heads) ** -0.5
    bf = jnp.bfloat16
    wqkv = jnp.concatenate([params['wq'] * scale, params['wk'], params['wv']], axis=-1)
    bqkv = jnp.concatenate([params['bq'] * scale, params['bk'], params['bv']], axis=-1)
    return dict(
        tok_emb=params['tok_emb'], pos_emb=params['pos_emb'],
        emb_ln_g=params['emb_ln_g'], emb_ln_b=params['emb_ln_b'],
        wqkv=wqkv.astype(bf), bqkv=bqkv,
        wo=params['wo'].astype(bf), bo=params['bo'],
        ln1_g=params['ln1_g'], ln1_b=params['ln1_b'],
        w1=params['w1'].astype(bf), b1=params['b1'],
        w2=params['w2'].astype(bf), b2=params['b2'],
        ln2_g=params['ln2_g'], ln2_b=params['ln2_b'],
    )


@functools.partial(jax.jit, static_argnames=("num_heads",))
def roberta_encoder_forward(tokens, p, num_heads):
    """RobertaEncoder.forward: tokens (B, T) int32 -> sentence_rep (B, C) f32."""
    B, T = tokens.shape
    pad = (tokens == PAD_IDX)
    nonpad_i = (~pad).astype(jnp.int32)
    # fairseq/pytext make_positions
    positions = jnp.cumsum(nonpad_i, axis=1) * nonpad_i + PAD_IDX
    # Embedding gathers + layer-0 embedding LayerNorm are glue (plain JAX, runs once).
    summed = p['tok_emb'][tokens] + p['pos_emb'][positions]               # (B, T, C) f32
    C = summed.shape[-1]
    L = p['wqkv'].shape[0]

    x0 = _layer_norm(summed, p['emb_ln_g'], p['emb_ln_b'])
    x0 = (x0 * nonpad_i[:, :, None].astype(jnp.float32)).astype(jnp.float32)  # (B, T, C)
    padneg = jnp.where(pad, NEG_BIG, 0.0).astype(jnp.float32)[:, None, :]     # (B, 1, T)

    args = (x0, padneg,
            p['wqkv'], p['bqkv'], p['wo'], p['bo'], p['ln1_g'], p['ln1_b'],
            p['w1'], p['b1'], p['w2'], p['b2'], p['ln2_g'], p['ln2_b'])

    def batch_spec(arr):
        nd = arr.ndim
        return pl.BlockSpec((1,) + arr.shape[1:],
                            lambda b, l, _nd=nd: (b,) + (0,) * (_nd - 1))

    def layer_spec(arr):
        nd = arr.ndim
        return pl.BlockSpec((1,) + arr.shape[1:],
                            lambda b, l, _nd=nd: (l,) + (0,) * (_nd - 1))

    in_specs = [batch_spec(x0), batch_spec(padneg)] + [layer_spec(a) for a in args[2:]]

    grid_spec = pltpu.PrefetchScalarGridSpec(
        num_scalar_prefetch=0,
        grid=(B, L),
        in_specs=in_specs,
        out_specs=pl.BlockSpec((1, T, C), lambda b, l: (b, 0, 0)),
        scratch_shapes=[pltpu.VMEM((T, C), jnp.bfloat16)],
    )
    out = pl.pallas_call(
        functools.partial(encoder_kernel, num_heads=num_heads),
        out_shape=jax.ShapeDtypeStruct((B, T, C), jnp.float32),
        grid_spec=grid_spec,
        input_output_aliases={0: 0},        # x0 seeds / shares the output HBM buffer
        compiler_params=pltpu.CompilerParams(
            dimension_semantics=("parallel", "arbitrary")),
    )(*args)

    sentence_rep = out[:, 0, :]
    # output_dropout: identity in eval mode
    return sentence_rep


# --------------------------- deterministic parameter init --------------------------

def make_roberta_params(key, vocab_size, embed_dim, num_heads, num_layers, max_pos):
    C, L, F = embed_dim, num_layers, 4 * embed_dim
    keys = jax.random.split(key, 2 + 6 * L)

    def nrm(k, shape):
        return 0.02 * jax.random.normal(k, shape, jnp.float32)

    tok = nrm(keys[0], (vocab_size, C)).at[PAD_IDX].set(0.0)   # Embedding padding row zeroed
    pos = nrm(keys[1], (max_pos, C)).at[PAD_IDX].set(0.0)

    def stack(off, shape):
        return jnp.stack([nrm(keys[2 + 6 * l + off], shape) for l in range(L)])

    return dict(
        tok_emb=tok, pos_emb=pos,
        emb_ln_g=jnp.ones((1, C), jnp.float32), emb_ln_b=jnp.zeros((1, C), jnp.float32),
        # per-head (C, Dh) projections fused to (C, C); head h owns cols h*Dh:(h+1)*Dh
        wq=stack(0, (C, C)), bq=jnp.zeros((L, 1, C), jnp.float32),
        wk=stack(1, (C, C)), bk=jnp.zeros((L, 1, C), jnp.float32),
        wv=stack(2, (C, C)), bv=jnp.zeros((L, 1, C), jnp.float32),
        wo=stack(3, (C, C)), bo=jnp.zeros((L, 1, C), jnp.float32),
        ln1_g=jnp.ones((L, 1, C), jnp.float32), ln1_b=jnp.zeros((L, 1, C), jnp.float32),
        w1=stack(4, (C, F)), b1=jnp.zeros((L, 1, F), jnp.float32),
        w2=stack(5, (F, C)), b2=jnp.zeros((L, 1, C), jnp.float32),
        ln2_g=jnp.ones((L, 1, C), jnp.float32), ln2_b=jnp.zeros((L, 1, C), jnp.float32),
    )


# ----------------------------------- pure-JAX ref (f32) ----------------------------------

def reference_forward(tokens, params, num_heads):
    erf = jax.scipy.special.erf
    gelu = lambda t: 0.5 * t * (1.0 + erf(t * INV_SQRT2))
    pad = (tokens == PAD_IDX)
    nonpad = (~pad).astype(jnp.int32)
    positions = jnp.cumsum(nonpad, axis=1) * nonpad + PAD_IDX
    x = params['tok_emb'][tokens] + params['pos_emb'][positions]
    x = _layer_norm(x, params['emb_ln_g'], params['emb_ln_b'])
    x = x * nonpad[:, :, None].astype(jnp.float32)
    B, T, C = x.shape
    H = num_heads
    Dh = C // H
    L = params['wq'].shape[0]
    bias = jnp.where(pad, NEG_BIG, 0.0)[:, None, None, :]
    for l in range(L):
        q = (x @ params['wq'][l] + params['bq'][l]) * (Dh ** -0.5)
        k = x @ params['wk'][l] + params['bk'][l]
        v = x @ params['wv'][l] + params['bv'][l]
        qh = q.reshape(B, T, H, Dh)
        kh = k.reshape(B, T, H, Dh)
        vh = v.reshape(B, T, H, Dh)
        s = jnp.einsum('bqhd,bkhd->bhqk', qh, kh) + bias
        p = jax.nn.softmax(s, axis=-1)
        ctx = jnp.einsum('bhqk,bkhd->bqhd', p, vh).reshape(B, T, C)
        attn = ctx @ params['wo'][l] + params['bo'][l]
        y = _layer_norm(x + attn, params['ln1_g'][l], params['ln1_b'][l])
        h = gelu(y @ params['w1'][l] + params['b1'][l])
        z = h @ params['w2'][l] + params['b2'][l] + y
        x = _layer_norm(z, params['ln2_g'][l], params['ln2_b'][l])
    return x[:, 0, :]


# ------------------------------------- main ----------------------------------------

if __name__ == "__main__":
    B, T = 2, 8
    VOCAB, C, H, L, MAX_POS = 50, 32, 4, 2, 32

    key = jax.random.PRNGKey(0)
    tok_key, param_key = jax.random.split(key)
    tokens = jax.random.randint(tok_key, (B, T), 2, VOCAB, dtype=jnp.int32)
    tokens = tokens.at[:, 0].set(0)            # BOS/CLS token
    tokens = tokens.at[1, 6:].set(PAD_IDX)     # pad tail of the second sequence

    params = make_roberta_params(param_key, VOCAB, C, H, L, MAX_POS)
    packed = prepare_encoder_params(params, num_heads=H)   # one-time bf16 cast / QKV fusion

    out = roberta_encoder_forward(tokens, packed, num_heads=H)
    out = jax.block_until_ready(out)

    ref = reference_forward(tokens, params, H)
    assert out.shape == (B, C), out.shape
    max_err = float(jnp.max(jnp.abs(out - ref)))
    assert max_err < 5e-2, f"max abs error vs reference: {max_err}"
    print("KERNEL_OK")
</pallas_src>

<mosaic_0001>
module attributes {stable_mosaic.version = 11 : i64} {
  func.func @encoder_kernel(%arg0: i32, %arg1: i32, %arg2: memref<1x8x32xf32, #tpu.memory_space<vmem>>, %arg3: memref<1x1x8xf32, #tpu.memory_space<vmem>>, %arg4: memref<1x32x96xbf16, #tpu.memory_space<vmem>>, %arg5: memref<1x1x96xf32, #tpu.memory_space<vmem>>, %arg6: memref<1x32x32xbf16, #tpu.memory_space<vmem>>, %arg7: memref<1x1x32xf32, #tpu.memory_space<vmem>>, %arg8: memref<1x1x32xf32, #tpu.memory_space<vmem>>, %arg9: memref<1x1x32xf32, #tpu.memory_space<vmem>>, %arg10: memref<1x32x128xbf16, #tpu.memory_space<vmem>>, %arg11: memref<1x1x128xf32, #tpu.memory_space<vmem>>, %arg12: memref<1x128x32xbf16, #tpu.memory_space<vmem>>, %arg13: memref<1x1x32xf32, #tpu.memory_space<vmem>>, %arg14: memref<1x1x32xf32, #tpu.memory_space<vmem>>, %arg15: memref<1x1x32xf32, #tpu.memory_space<vmem>>, %arg16: memref<1x8x32xf32, #tpu.memory_space<vmem>>, %arg17: memref<8x32xbf16, #tpu.memory_space<vmem>>) attributes {dimension_semantics = [#tpu.dimension_semantics<parallel>, #tpu.dimension_semantics<arbitrary>], iteration_bounds = array<i64: 2, 2>, scalar_prefetch = 0 : i64, scratch_operands = 1 : i64, tpu.core_type = #tpu.core_type<tc>, window_params = [{transform_indices = @transform_0, window_bounds = array<i64: 1, 8, 32>}, {transform_indices = @transform_1, window_bounds = array<i64: 1, 1, 8>}, {transform_indices = @transform_2, window_bounds = array<i64: 1, 32, 96>}, {transform_indices = @transform_3, window_bounds = array<i64: 1, 1, 96>}, {transform_indices = @transform_4, window_bounds = array<i64: 1, 32, 32>}, {transform_indices = @transform_5, window_bounds = array<i64: 1, 1, 32>}, {transform_indices = @transform_6, window_bounds = array<i64: 1, 1, 32>}, {transform_indices = @transform_7, window_bounds = array<i64: 1, 1, 32>}, {transform_indices = @transform_8, window_bounds = array<i64: 1, 32, 128>}, {transform_indices = @transform_9, window_bounds = array<i64: 1, 1, 128>}, {transform_indices = @transform_10, window_bounds = array<i64: 1, 128, 32>}, {transform_indices = @transform_11, window_bounds = array<i64: 1, 1, 32>}, {transform_indices = @transform_12, window_bounds = array<i64: 1, 1, 32>}, {transform_indices = @transform_13, window_bounds = array<i64: 1, 1, 32>}, {transform_indices = @transform_14, window_bounds = array<i64: 1, 8, 32>}]} {
    %c0_i32 = arith.constant 0 : i32
    %0 = arith.cmpi eq, %arg1, %c0_i32 : i32
    %1 = arith.extui %0 : i1 to i32
    %c0_i32_0 = arith.constant 0 : i32
    %2 = arith.cmpi ne, %1, %c0_i32_0 : i32
    scf.if %2 {
      %c0_85 = arith.constant 0 : index
      %c0_86 = arith.constant 0 : index
      %c0_87 = arith.constant 0 : index
      %191 = vector.load %arg2[%c0_85, %c0_86, %c0_87] : memref<1x8x32xf32, #tpu.memory_space<vmem>>, vector<1x8x32xf32>
      %c0_88 = arith.constant 0 : index
      %c0_89 = arith.constant 0 : index
      %c0_90 = arith.constant 0 : index
      %192 = vector.load %arg16[%c0_88, %c0_89, %c0_90] : memref<1x8x32xf32, #tpu.memory_space<vmem>>, vector<1x8x32xf32>
      tpu.vector_store %arg16[%c0_88, %c0_89, %c0_90], %191 {strides = array<i32>} : memref<1x8x32xf32, #tpu.memory_space<vmem>>, vector<1x8x32xf32>,
    } else {
    }
    %c0 = arith.constant 0 : index
    %c0_1 = arith.constant 0 : index
    %c0_2 = arith.constant 0 : index
    %3 = vector.load %arg16[%c0, %c0_1, %c0_2] : memref<1x8x32xf32, #tpu.memory_space<vmem>>, vector<1x8x32xf32>
    %4 = vector.shape_cast %3 : vector<1x8x32xf32> to vector<8x32xf32>
    %5 = arith.truncf %4 : vector<8x32xf32> to vector<8x32xbf16>
    %c0_3 = arith.constant 0 : index
    %c0_4 = arith.constant 0 : index
    %c0_5 = arith.constant 0 : index
    %6 = vector.load %arg3[%c0_3, %c0_4, %c0_5] : memref<1x1x8xf32, #tpu.memory_space<vmem>>, vector<1x1x8xf32>
    %7 = vector.shape_cast %6 : vector<1x1x8xf32> to vector<1x8xf32>
    %c0_6 = arith.constant 0 : index
    %c0_7 = arith.constant 0 : index
    %c0_8 = arith.constant 0 : index
    %8 = vector.load %arg4[%c0_6, %c0_7, %c0_8] : memref<1x32x96xbf16, #tpu.memory_space<vmem>>, vector<1x32x96xbf16>
    %9 = vector.shape_cast %8 : vector<1x32x96xbf16> to vector<32x96xbf16>
    %cst = arith.constant dense<0.000000e+00> : vector<8x96xf32>
    %10 = tpu.matmul %5, %9, %cst {dimension_numbers = #tpu.dot_dimension_numbers<[1], [0], [0], [1], [0, 0, 1, 1], [], []>} : vector<8x32xbf16>, vector<32x96xbf16>, vector<8x96xf32> -> vector<8x96xf32>
    %c0_9 = arith.constant 0 : index
    %c0_10 = arith.constant 0 : index
    %c0_11 = arith.constant 0 : index
    %11 = vector.load %arg5[%c0_9, %c0_10, %c0_11] : memref<1x1x96xf32, #tpu.memory_space<vmem>>, vector<1x1x96xf32>
    %12 = vector.shape_cast %11 : vector<1x1x96xf32> to vector<1x96xf32>
    %13 = vector.broadcast %12 : vector<1x96xf32> to vector<8x96xf32>
    %14 = arith.addf %10, %13 : vector<8x96xf32>
    %15 = vector.extract_strided_slice %14 {offsets = [0, 0], sizes = [8, 32], strides = [1, 1]} : vector<8x96xf32> to vector<8x32xf32>
    %16 = arith.truncf %15 : vector<8x32xf32> to vector<8x32xbf16>
    %17 = vector.extract_strided_slice %14 {offsets = [0, 32], sizes = [8, 32], strides = [1, 1]} : vector<8x96xf32> to vector<8x32xf32>
    %18 = arith.truncf %17 : vector<8x32xf32> to vector<8x32xbf16>
    %19 = vector.extract_strided_slice %14 {offsets = [0, 64], sizes = [8, 32], strides = [1, 1]} : vector<8x96xf32> to vector<8x32xf32>
    %20 = arith.truncf %19 : vector<8x32xf32> to vector<8x32xbf16>
    %21 = vector.extract_strided_slice %16 {offsets = [0, 0], sizes = [8, 8], strides = [1, 1]} : vector<8x32xbf16> to vector<8x8xbf16>
    %22 = vector.extract_strided_slice %18 {offsets = [0, 0], sizes = [8, 8], strides = [1, 1]} : vector<8x32xbf16> to vector<8x8xbf16>
    %23 = vector.extract_strided_slice %20 {offsets = [0, 0], sizes = [8, 8], strides = [1, 1]} : vector<8x32xbf16> to vector<8x8xbf16>
    %cst_12 = arith.constant dense<0.000000e+00> : vector<8x8xf32>
    %24 = tpu.matmul %21, %22, %cst_12 {dimension_numbers = #tpu.dot_dimension_numbers<[1], [1], [0], [0], [0, 0, 1, 0], [], []>} : vector<8x8xbf16>, vector<8x8xbf16>, vector<8x8xf32> -> vector<8x8xf32>
    %25 = vector.broadcast %7 : vector<1x8xf32> to vector<8x8xf32>
    %26 = arith.addf %24, %25 : vector<8x8xf32>
    %cst_13 = arith.constant dense<0xFF800000> : vector<8xf32>
    %27 = vector.multi_reduction <maximumf>, %26, %cst_13 [1] : vector<8x8xf32> to vector<8xf32>
    %28 = vector.shape_cast %27 : vector<8xf32> to vector<8x1xf32>
    %29 = vector.broadcast %28 : vector<8x1xf32> to vector<8x8xf32>
    %30 = arith.subf %26, %29 : vector<8x8xf32>
    %31 = math.exp %30 : vector<8x8xf32>
    %cst_14 = arith.constant dense<0.000000e+00> : vector<8xf32>
    %32 = vector.multi_reduction <add>, %31, %cst_14 [1] : vector<8x8xf32> to vector<8xf32>
    %33 = vector.shape_cast %32 : vector<8xf32> to vector<8x1xf32>
    %34 = tpu.reciprocal %33 {approx = true} : vector<8x1xf32> -> vector<8x1xf32>
    %35 = vector.broadcast %34 : vector<8x1xf32> to vector<8x8xf32>
    %36 = arith.mulf %31, %35 : vector<8x8xf32>
    %37 = arith.truncf %36 : vector<8x8xf32> to vector<8x8xbf16>
    %cst_15 = arith.constant dense<0.000000e+00> : vector<8x8xf32>
    %38 = tpu.matmul %37, %23, %cst_15 {dimension_numbers = #tpu.dot_dimension_numbers<[1], [0], [0], [1], [0, 0, 1, 1], [], []>} : vector<8x8xbf16>, vector<8x8xbf16>, vector<8x8xf32> -> vector<8x8xf32>
    %39 = arith.truncf %38 : vector<8x8xf32> to vector<8x8xbf16>
    %c0_16 = arith.constant 0 : index
    %c0_17 = arith.constant 0 : index
    %40 = vector.load %arg17[%c0_16, %c0_17] : memref<8x32xbf16, #tpu.memory_space<vmem>>, vector<8x8xbf16>
    tpu.vector_store %arg17[%c0_16, %c0_17], %39 {strides = array<i32>} : memref<8x32xbf16, #tpu.memory_space<vmem>>, vector<8x8xbf16>,
    %41 = vector.extract_strided_slice %16 {offsets = [0, 8], sizes = [8, 8], strides = [1, 1]} : vector<8x32xbf16> to vector<8x8xbf16>
    %42 = vector.extract_strided_slice %18 {offsets = [0, 8], sizes = [8, 8], strides = [1, 1]} : vector<8x32xbf16> to vector<8x8xbf16>
    %43 = vector.extract_strided_slice %20 {offsets = [0, 8], sizes = [8, 8], strides = [1, 1]} : vector<8x32xbf16> to vector<8x8xbf16>
    %cst_18 = arith.constant dense<0.000000e+00> : vector<8x8xf32>
    %44 = tpu.matmul %41, %42, %cst_18 {dimension_numbers = #tpu.dot_dimension_numbers<[1], [1], [0], [0], [0, 0, 1, 0], [], []>} : vector<8x8xbf16>, vector<8x8xbf16>, vector<8x8xf32> -> vector<8x8xf32>
    %45 = vector.broadcast %7 : vector<1x8xf32> to vector<8x8xf32>
    %46 = arith.addf %44, %45 : vector<8x8xf32>
    %cst_19 = arith.constant dense<0xFF800000> : vector<8xf32>
    %47 = vector.multi_reduction <maximumf>, %46, %cst_19 [1] : vector<8x8xf32> to vector<8xf32>
    %48 = vector.shape_cast %47 : vector<8xf32> to vector<8x1xf32>
    %49 = vector.broadcast %48 : vector<8x1xf32> to vector<8x8xf32>
    %50 = arith.subf %46, %49 : vector<8x8xf32>
    %51 = math.exp %50 : vector<8x8xf32>
    %cst_20 = arith.constant dense<0.000000e+00> : vector<8xf32>
    %52 = vector.multi_reduction <add>, %51, %cst_20 [1] : vector<8x8xf32> to vector<8xf32>
    %53 = vector.shape_cast %52 : vector<8xf32> to vector<8x1xf32>
    %54 = tpu.reciprocal %53 {approx = true} : vector<8x1xf32> -> vector<8x1xf32>
    %55 = vector.broadcast %54 : vector<8x1xf32> to vector<8x8xf32>
    %56 = arith.mulf %51, %55 : vector<8x8xf32>
    %57 = arith.truncf %56 : vector<8x8xf32> to vector<8x8xbf16>
    %cst_21 = arith.constant dense<0.000000e+00> : vector<8x8xf32>
    %58 = tpu.matmul %57, %43, %cst_21 {dimension_numbers = #tpu.dot_dimension_numbers<[1], [0], [0], [1], [0, 0, 1, 1], [], []>} : vector<8x8xbf16>, vector<8x8xbf16>, vector<8x8xf32> -> vector<8x8xf32>
    %59 = arith.truncf %58 : vector<8x8xf32> to vector<8x8xbf16>
    %c0_22 = arith.constant 0 : index
    %c8 = arith.constant 8 : index
    %60 = vector.load %arg17[%c0_22, %c8] : memref<8x32xbf16, #tpu.memory_space<vmem>>, vector<8x8xbf16>
    tpu.vector_store %arg17[%c0_22, %c8], %59 {strides = array<i32>} : memref<8x32xbf16, #tpu.memory_space<vmem>>, vector<8x8xbf16>,
    %61 = vector.extract_strided_slice %16 {offsets = [0, 16], sizes = [8, 8], strides = [1, 1]} : vector<8x32xbf16> to vector<8x8xbf16>
    %62 = vector.extract_strided_slice %18 {offsets = [0, 16], sizes = [8, 8], strides = [1, 1]} : vector<8x32xbf16> to vector<8x8xbf16>
    %63 = vector.extract_strided_slice %20 {offsets = [0, 16], sizes = [8, 8], strides = [1, 1]} : vector<8x32xbf16> to vector<8x8xbf16>
    %cst_23 = arith.constant dense<0.000000e+00> : vector<8x8xf32>
    %64 = tpu.matmul %61, %62, %cst_23 {dimension_numbers = #tpu.dot_dimension_numbers<[1], [1], [0], [0], [0, 0, 1, 0], [], []>} : vector<8x8xbf16>, vector<8x8xbf16>, vector<8x8xf32> -> vector<8x8xf32>
    %65 = vector.broadcast %7 : vector<1x8xf32> to vector<8x8xf32>
    %66 = arith.addf %64, %65 : vector<8x8xf32>
    %cst_24 = arith.constant dense<0xFF800000> : vector<8xf32>
    %67 = vector.multi_reduction <maximumf>, %66, %cst_24 [1] : vector<8x8xf32> to vector<8xf32>
    %68 = vector.shape_cast %67 : vector<8xf32> to vector<8x1xf32>
    %69 = vector.broadcast %68 : vector<8x1xf32> to vector<8x8xf32>
    %70 = arith.subf %66, %69 : vector<8x8xf32>
    %71 = math.exp %70 : vector<8x8xf32>
    %cst_25 = arith.constant dense<0.000000e+00> : vector<8xf32>
    %72 = vector.multi_reduction <add>, %71, %cst_25 [1] : vector<8x8xf32> to vector<8xf32>
    %73 = vector.shape_cast %72 : vector<8xf32> to vector<8x1xf32>
    %74 = tpu.reciprocal %73 {approx = true} : vector<8x1xf32> -> vector<8x1xf32>
    %75 = vector.broadcast %74 : vector<8x1xf32> to vector<8x8xf32>
    %76 = arith.mulf %71, %75 : vector<8x8xf32>
    %77 = arith.truncf %76 : vector<8x8xf32> to vector<8x8xbf16>
    %cst_26 = arith.constant dense<0.000000e+00> : vector<8x8xf32>
    %78 = tpu.matmul %77, %63, %cst_26 {dimension_numbers = #tpu.dot_dimension_numbers<[1], [0], [0], [1], [0, 0, 1, 1], [], []>} : vector<8x8xbf16>, vector<8x8xbf16>, vector<8x8xf32> -> vector<8x8xf32>
    %79 = arith.truncf %78 : vector<8x8xf32> to vector<8x8xbf16>
    %c0_27 = arith.constant 0 : index
    %c16 = arith.constant 16 : index
    %80 = vector.load %arg17[%c0_27, %c16] : memref<8x32xbf16, #tpu.memory_space<vmem>>, vector<8x8xbf16>
    tpu.vector_store %arg17[%c0_27, %c16], %79 {strides = array<i32>} : memref<8x32xbf16, #tpu.memory_space<vmem>>, vector<8x8xbf16>,
    %81 = vector.extract_strided_slice %16 {offsets = [0, 24], sizes = [8, 8], strides = [1, 1]} : vector<8x32xbf16> to vector<8x8xbf16>
    %82 = vector.extract_strided_slice %18 {offsets = [0, 24], sizes = [8, 8], strides = [1, 1]} : vector<8x32xbf16> to vector<8x8xbf16>
    %83 = vector.extract_strided_slice %20 {offsets = [0, 24], sizes = [8, 8], strides = [1, 1]} : vector<8x32xbf16> to vector<8x8xbf16>
    %cst_28 = arith.constant dense<0.000000e+00> : vector<8x8xf32>
    %84 = tpu.matmul %81, %82, %cst_28 {dimension_numbers = #tpu.dot_dimension_numbers<[1], [1], [0], [0], [0, 0, 1, 0], [], []>} : vector<8x8xbf16>, vector<8x8xbf16>, vector<8x8xf32> -> vector<8x8xf32>
    %85 = vector.broadcast %7 : vector<1x8xf32> to vector<8x8xf32>
    %86 = arith.addf %84, %85 : vector<8x8xf32>
    %cst_29 = arith.constant dense<0xFF800000> : vector<8xf32>
    %87 = vector.multi_reduction <maximumf>, %86, %cst_29 [1] : vector<8x8xf32> to vector<8xf32>
    %88 = vector.shape_cast %87 : vector<8xf32> to vector<8x1xf32>
    %89 = vector.broadcast %88 : vector<8x1xf32> to vector<8x8xf32>
    %90 = arith.subf %86, %89 : vector<8x8xf32>
    %91 = math.exp %90 : vector<8x8xf32>
    %cst_30 = arith.constant dense<0.000000e+00> : vector<8xf32>
    %92 = vector.multi_reduction <add>, %91, %cst_30 [1] : vector<8x8xf32> to vector<8xf32>
    %93 = vector.shape_cast %92 : vector<8xf32> to vector<8x1xf32>
    %94 = tpu.reciprocal %93 {approx = true} : vector<8x1xf32> -> vector<8x1xf32>
    %95 = vector.broadcast %94 : vector<8x1xf32> to vector<8x8xf32>
    %96 = arith.mulf %91, %95 : vector<8x8xf32>
    %97 = arith.truncf %96 : vector<8x8xf32> to vector<8x8xbf16>
    %cst_31 = arith.constant dense<0.000000e+00> : vector<8x8xf32>
    %98 = tpu.matmul %97, %83, %cst_31 {dimension_numbers = #tpu.dot_dimension_numbers<[1], [0], [0], [1], [0, 0, 1, 1], [], []>} : vector<8x8xbf16>, vector<8x8xbf16>, vector<8x8xf32> -> vector<8x8xf32>
    %99 = arith.truncf %98 : vector<8x8xf32> to vector<8x8xbf16>
    %c0_32 = arith.constant 0 : index
    %c24 = arith.constant 24 : index
    %100 = vector.load %arg17[%c0_32, %c24] : memref<8x32xbf16, #tpu.memory_space<vmem>>, vector<8x8xbf16>
    tpu.vector_store %arg17[%c0_32, %c24], %99 {strides = array<i32>} : memref<8x32xbf16, #tpu.memory_space<vmem>>, vector<8x8xbf16>,
    %c0_33 = arith.constant 0 : index
    %c0_34 = arith.constant 0 : index
    %101 = vector.load %arg17[%c0_33, %c0_34] : memref<8x32xbf16, #tpu.memory_space<vmem>>, vector<8x32xbf16>
    %c0_35 = arith.constant 0 : index
    %c0_36 = arith.constant 0 : index
    %c0_37 = arith.constant 0 : index
    %102 = vector.load %arg6[%c0_35, %c0_36, %c0_37] : memref<1x32x32xbf16, #tpu.memory_space<vmem>>, vector<1x32x32xbf16>
    %103 = vector.shape_cast %102 : vector<1x32x32xbf16> to vector<32x32xbf16>
    %cst_38 = arith.constant dense<0.000000e+00> : vector<8x32xf32>
    %104 = tpu.matmul %101, %103, %cst_38 {dimension_numbers = #tpu.dot_dimension_numbers<[1], [0], [0], [1], [0, 0, 1, 1], [], []>} : vector<8x32xbf16>, vector<32x32xbf16>, vector<8x32xf32> -> vector<8x32xf32>
    %c0_39 = arith.constant 0 : index
    %c0_40 = arith.constant 0 : index
    %c0_41 = arith.constant 0 : index
    %105 = vector.load %arg7[%c0_39, %c0_40, %c0_41] : memref<1x1x32xf32, #tpu.memory_space<vmem>>, vector<1x1x32xf32>
    %106 = vector.shape_cast %105 : vector<1x1x32xf32> to vector<1x32xf32>
    %107 = vector.broadcast %106 : vector<1x32xf32> to vector<8x32xf32>
    %108 = arith.addf %104, %107 : vector<8x32xf32>
    %109 = arith.addf %4, %108 : vector<8x32xf32>
    %c0_42 = arith.constant 0 : index
    %c0_43 = arith.constant 0 : index
    %c0_44 = arith.constant 0 : index
    %110 = vector.load %arg8[%c0_42, %c0_43, %c0_44] : memref<1x1x32xf32, #tpu.memory_space<vmem>>, vector<1x1x32xf32>
    %111 = vector.shape_cast %110 : vector<1x1x32xf32> to vector<1x32xf32>
    %c0_45 = arith.constant 0 : index
    %c0_46 = arith.constant 0 : index
    %c0_47 = arith.constant 0 : index
    %112 = vector.load %arg9[%c0_45, %c0_46, %c0_47] : memref<1x1x32xf32, #tpu.memory_space<vmem>>, vector<1x1x32xf32>
    %113 = vector.shape_cast %112 : vector<1x1x32xf32> to vector<1x32xf32>
    %cst_48 = arith.constant dense<0.000000e+00> : vector<8xf32>
    %114 = vector.multi_reduction <add>, %109, %cst_48 [1] : vector<8x32xf32> to vector<8xf32>
    %115 = vector.shape_cast %114 : vector<8xf32> to vector<8x1xf32>
    %cst_49 = arith.constant 3.200000e+01 : f32
    %116 = vector.broadcast %cst_49 : f32 to vector<8x1xf32>
    %117 = arith.divf %115, %116 : vector<8x1xf32>
    %118 = vector.broadcast %117 : vector<8x1xf32> to vector<8x32xf32>
    %119 = arith.subf %109, %118 : vector<8x32xf32>
    %120 = arith.mulf %119, %119 : vector<8x32xf32>
    %cst_50 = arith.constant dense<0.000000e+00> : vector<8xf32>
    %121 = vector.multi_reduction <add>, %120, %cst_50 [1] : vector<8x32xf32> to vector<8xf32>
    %122 = vector.shape_cast %121 : vector<8xf32> to vector<8x1xf32>
    %cst_51 = arith.constant 3.200000e+01 : f32
    %123 = vector.broadcast %cst_51 : f32 to vector<8x1xf32>
    %124 = arith.divf %122, %123 : vector<8x1xf32>
    %cst_52 = arith.constant 9.99999974E-6 : f32
    %125 = vector.broadcast %cst_52 : f32 to vector<8x1xf32>
    %126 = arith.addf %124, %125 : vector<8x1xf32>
    %127 = math.rsqrt %126 : vector<8x1xf32>
    %128 = vector.broadcast %127 : vector<8x1xf32> to vector<8x32xf32>
    %129 = arith.mulf %119, %128 : vector<8x32xf32>
    %130 = vector.broadcast %111 : vector<1x32xf32> to vector<8x32xf32>
    %131 = arith.mulf %129, %130 : vector<8x32xf32>
    %132 = vector.broadcast %113 : vector<1x32xf32> to vector<8x32xf32>
    %133 = arith.addf %131, %132 : vector<8x32xf32>
    %134 = arith.truncf %133 : vector<8x32xf32> to vector<8x32xbf16>
    %c0_53 = arith.constant 0 : index
    %c0_54 = arith.constant 0 : index
    %c0_55 = arith.constant 0 : index
    %135 = vector.load %arg10[%c0_53, %c0_54, %c0_55] : memref<1x32x128xbf16, #tpu.memory_space<vmem>>, vector<1x32x128xbf16>
    %136 = vector.shape_cast %135 : vector<1x32x128xbf16> to vector<32x128xbf16>
    %cst_56 = arith.constant dense<0.000000e+00> : vector<8x128xf32>
    %137 = tpu.matmul %134, %136, %cst_56 {dimension_numbers = #tpu.dot_dimension_numbers<[1], [0], [0], [1], [0, 0, 1, 1], [], []>} : vector<8x32xbf16>, vector<32x128xbf16>, vector<8x128xf32> -> vector<8x128xf32>
    %c0_57 = arith.constant 0 : index
    %c0_58 = arith.constant 0 : index
    %c0_59 = arith.constant 0 : index
    %138 = vector.load %arg11[%c0_57, %c0_58, %c0_59] : memref<1x1x128xf32, #tpu.memory_space<vmem>>, vector<1x1x128xf32>
    %139 = vector.shape_cast %138 : vector<1x1x128xf32> to vector<1x128xf32>
    %140 = vector.broadcast %139 : vector<1x128xf32> to vector<8x128xf32>
    %141 = arith.addf %137, %140 : vector<8x128xf32>
    %cst_60 = arith.constant 5.000000e-01 : f32
    %142 = vector.broadcast %cst_60 : f32 to vector<8x128xf32>
    %143 = arith.mulf %142, %141 : vector<8x128xf32>
    %cst_61 = arith.constant 4.471500e-02 : f32
    %144 = vector.broadcast %cst_61 : f32 to vector<8x128xf32>
    %145 = arith.mulf %144, %141 : vector<8x128xf32>
    %146 = arith.mulf %145, %141 : vector<8x128xf32>
    %147 = arith.mulf %146, %141 : vector<8x128xf32>
    %148 = arith.addf %141, %147 : vector<8x128xf32>
    %cst_62 = arith.constant 0.797884583 : f32
    %149 = vector.broadcast %cst_62 : f32 to vector<8x128xf32>
    %150 = arith.mulf %149, %148 : vector<8x128xf32>
    %151 = math.tanh %150 : vector<8x128xf32>
    %cst_63 = arith.constant 1.000000e+00 : f32
    %152 = vector.broadcast %cst_63 : f32 to vector<8x128xf32>
    %153 = arith.addf %152, %151 : vector<8x128xf32>
    %154 = arith.mulf %143, %153 : vector<8x128xf32>
    %155 = arith.truncf %154 : vector<8x128xf32> to vector<8x128xbf16>
    %c0_64 = arith.constant 0 : index
    %c0_65 = arith.constant 0 : index
    %c0_66 = arith.constant 0 : index
    %156 = vector.load %arg12[%c0_64, %c0_65, %c0_66] : memref<1x128x32xbf16, #tpu.memory_space<vmem>>, vector<1x128x32xbf16>
    %157 = vector.shape_cast %156 : vector<1x128x32xbf16> to vector<128x32xbf16>
    %cst_67 = arith.constant dense<0.000000e+00> : vector<8x32xf32>
    %158 = tpu.matmul %155, %157, %cst_67 {dimension_numbers = #tpu.dot_dimension_numbers<[1], [0], [0], [1], [0, 0, 1, 1], [], []>} : vector<8x128xbf16>, vector<128x32xbf16>, vector<8x32xf32> -> vector<8x32xf32>
    %c0_68 = arith.constant 0 : index
    %c0_69 = arith.constant 0 : index
    %c0_70 = arith.constant 0 : index
    %159 = vector.load %arg13[%c0_68, %c0_69, %c0_70] : memref<1x1x32xf32, #tpu.memory_space<vmem>>, vector<1x1x32xf32>
    %160 = vector.shape_cast %159 : vector<1x1x32xf32> to vector<1x32xf32>
    %161 = vector.broadcast %160 : vector<1x32xf32> to vector<8x32xf32>
    %162 = arith.addf %158, %161 : vector<8x32xf32>
    %163 = arith.addf %162, %133 : vector<8x32xf32>
    %c0_71 = arith.constant 0 : index
    %c0_72 = arith.constant 0 : index
    %c0_73 = arith.constant 0 : index
    %164 = vector.load %arg14[%c0_71, %c0_72, %c0_73] : memref<1x1x32xf32, #tpu.memory_space<vmem>>, vector<1x1x32xf32>
    %165 = vector.shape_cast %164 : vector<1x1x32xf32> to vector<1x32xf32>
    %c0_74 = arith.constant 0 : index
    %c0_75 = arith.constant 0 : index
    %c0_76 = arith.constant 0 : index
    %166 = vector.load %arg15[%c0_74, %c0_75, %c0_76] : memref<1x1x32xf32, #tpu.memory_space<vmem>>, vector<1x1x32xf32>
    %167 = vector.shape_cast %166 : vector<1x1x32xf32> to vector<1x32xf32>
    %cst_77 = arith.constant dense<0.000000e+00> : vector<8xf32>
    %168 = vector.multi_reduction <add>, %163, %cst_77 [1] : vector<8x32xf32> to vector<8xf32>
    %169 = vector.shape_cast %168 : vector<8xf32> to vector<8x1xf32>
    %cst_78 = arith.constant 3.200000e+01 : f32
    %170 = vector.broadcast %cst_78 : f32 to vector<8x1xf32>
    %171 = arith.divf %169, %170 : vector<8x1xf32>
    %172 = vector.broadcast %171 : vector<8x1xf32> to vector<8x32xf32>
    %173 = arith.subf %163, %172 : vector<8x32xf32>
    %174 = arith.mulf %173, %173 : vector<8x32xf32>
    %cst_79 = arith.constant dense<0.000000e+00> : vector<8xf32>
    %175 = vector.multi_reduction <add>, %174, %cst_79 [1] : vector<8x32xf32> to vector<8xf32>
    %176 = vector.shape_cast %175 : vector<8xf32> to vector<8x1xf32>
    %cst_80 = arith.constant 3.200000e+01 : f32
    %177 = vector.broadcast %cst_80 : f32 to vector<8x1xf32>
    %178 = arith.divf %176, %177 : vector<8x1xf32>
    %cst_81 = arith.constant 9.99999974E-6 : f32
    %179 = vector.broadcast %cst_81 : f32 to vector<8x1xf32>
    %180 = arith.addf %178, %179 : vector<8x1xf32>
    %181 = math.rsqrt %180 : vector<8x1xf32>
    %182 = vector.broadcast %181 : vector<8x1xf32> to vector<8x32xf32>
    %183 = arith.mulf %173, %182 : vector<8x32xf32>
    %184 = vector.broadcast %165 : vector<1x32xf32> to vector<8x32xf32>
    %185 = arith.mulf %183, %184 : vector<8x32xf32>
    %186 = vector.broadcast %167 : vector<1x32xf32> to vector<8x32xf32>
    %187 = arith.addf %185, %186 : vector<8x32xf32>
    %c0_82 = arith.constant 0 : index
    %c0_83 = arith.constant 0 : index
    %c0_84 = arith.constant 0 : index
    %188 = vector.load %arg16[%c0_82, %c0_83, %c0_84] : memref<1x8x32xf32, #tpu.memory_space<vmem>>, vector<1x8x32xf32>
    %189 = vector.shape_cast %188 : vector<1x8x32xf32> to vector<8x32xf32>
    %190 = vector.shape_cast %187 : vector<8x32xf32> to vector<1x8x32xf32>
    tpu.vector_store %arg16[%c0_82, %c0_83, %c0_84], %190 {strides = array<i32>} : memref<1x8x32xf32, #tpu.memory_space<vmem>>, vector<1x8x32xf32>,
    return
  }
  func.func @transform_0(%arg0: i32, %arg1: i32) -> (i32, i32, i32) {
    %c0_i32 = arith.constant 0 : i32
    %c0_i32_0 = arith.constant 0 : i32
    %c0_i32_1 = arith.constant 0 : i32
    return %arg0, %c0_i32, %c0_i32_0 : i32, i32, i32
  }
  func.func @transform_1(%arg0: i32, %arg1: i32) -> (i32, i32, i32) {
    %c0_i32 = arith.constant 0 : i32
    %c0_i32_0 = arith.constant 0 : i32
    %c0_i32_1 = arith.constant 0 : i32
    return %arg0, %c0_i32, %c0_i32_0 : i32, i32, i32
  }
  func.func @transform_2(%arg0: i32, %arg1: i32) -> (i32, i32, i32) {
    %c0_i32 = arith.constant 0 : i32
    %c0_i32_0 = arith.constant 0 : i32
    %c0_i32_1 = arith.constant 0 : i32
    return %arg1, %c0_i32, %c0_i32_0 : i32, i32, i32
  }
  func.func @transform_3(%arg0: i32, %arg1: i32) -> (i32, i32, i32) {
    %c0_i32 = arith.constant 0 : i32
    %c0_i32_0 = arith.constant 0 : i32
    %c0_i32_1 = arith.constant 0 : i32
    return %arg1, %c0_i32, %c0_i32_0 : i32, i32, i32
  }
  func.func @transform_4(%arg0: i32, %arg1: i32) -> (i32, i32, i32) {
    %c0_i32 = arith.constant 0 : i32
    %c0_i32_0 = arith.constant 0 : i32
    %c0_i32_1 = arith.constant 0 : i32
    return %arg1, %c0_i32, %c0_i32_0 : i32, i32, i32
  }
  func.func @transform_5(%arg0: i32, %arg1: i32) -> (i32, i32, i32) {
    %c0_i32 = arith.constant 0 : i32
    %c0_i32_0 = arith.constant 0 : i32
    %c0_i32_1 = arith.constant 0 : i32
    return %arg1, %c0_i32, %c0_i32_0 : i32, i32, i32
  }
  func.func @transform_6(%arg0: i32, %arg1: i32) -> (i32, i32, i32) {
    %c0_i32 = arith.constant 0 : i32
    %c0_i32_0 = arith.constant 0 : i32
    %c0_i32_1 = arith.constant 0 : i32
    return %arg1, %c0_i32, %c0_i32_0 : i32, i32, i32
  }
  func.func @transform_7(%arg0: i32, %arg1: i32) -> (i32, i32, i32) {
    %c0_i32 = arith.constant 0 : i32
    %c0_i32_0 = arith.constant 0 : i32
    %c0_i32_1 = arith.constant 0 : i32
    return %arg1, %c0_i32, %c0_i32_0 : i32, i32, i32
  }
  func.func @transform_8(%arg0: i32, %arg1: i32) -> (i32, i32, i32) {
    %c0_i32 = arith.constant 0 : i32
    %c0_i32_0 = arith.constant 0 : i32
    %c0_i32_1 = arith.constant 0 : i32
    return %arg1, %c0_i32, %c0_i32_0 : i32, i32, i32
  }
  func.func @transform_9(%arg0: i32, %arg1: i32) -> (i32, i32, i32) {
    %c0_i32 = arith.constant 0 : i32
    %c0_i32_0 = arith.constant 0 : i32
    %c0_i32_1 = arith.constant 0 : i32
    return %arg1, %c0_i32, %c0_i32_0 : i32, i32, i32
  }
  func.func @transform_10(%arg0: i32, %arg1: i32) -> (i32, i32, i32) {
    %c0_i32 = arith.constant 0 : i32
    %c0_i32_0 = arith.constant 0 : i32
    %c0_i32_1 = arith.constant 0 : i32
    return %arg1, %c0_i32, %c0_i32_0 : i32, i32, i32
  }
  func.func @transform_11(%arg0: i32, %arg1: i32) -> (i32, i32, i32) {
    %c0_i32 = arith.constant 0 : i32
    %c0_i32_0 = arith.constant 0 : i32
    %c0_i32_1 = arith.constant 0 : i32
    return %arg1, %c0_i32, %c0_i32_0 : i32, i32, i32
  }
  func.func @transform_12(%arg0: i32, %arg1: i32) -> (i32, i32, i32) {
    %c0_i32 = arith.constant 0 : i32
    %c0_i32_0 = arith.constant 0 : i32
    %c0_i32_1 = arith.constant 0 : i32
    return %arg1, %c0_i32, %c0_i32_0 : i32, i32, i32
  }
  func.func @transform_13(%arg0: i32, %arg1: i32) -> (i32, i32, i32) {
    %c0_i32 = arith.constant 0 : i32
    %c0_i32_0 = arith.constant 0 : i32
    %c0_i32_1 = arith.constant 0 : i32
    return %arg1, %c0_i32, %c0_i32_0 : i32, i32, i32
  }
  func.func @transform_14(%arg0: i32, %arg1: i32) -> (i32, i32, i32) {
    %c0_i32 = arith.constant 0 : i32
    %c0_i32_0 = arith.constant 0 : i32
    %c0_i32_1 = arith.constant 0 : i32
    return %arg0, %c0_i32, %c0_i32_0 : i32, i32, i32
  }
}

</mosaic_0001>

<llo_original>
// kernel: roberta_encoder_forward.1
$region0: #{roberta_encoder_forward.1}
  #allocation0 [shape = 'u32[]', space=smem, size = 0x4, offset = 0x4, fixed_abs, tag = 'smem constant byte address 0x4 - core index']
  #allocation1 [shape = 'u32[144,128]{1,0:T(1,128)}', space=vmem, size = 0x12000, scoped, tag = 'internal scratch']
  #allocation2 [shape = 'bf16[8,32]{1,0:T(8,128)(2,1)}', space=vmem, size = 0x800, scoped, tag = 'scratch operand']
  %s0 = inlined_call_operand.vmem [shape: f32[2,8,32], index: 0, kind: input, shape index: {}, may-alias: {0,14}]
  %s1 = inlined_call_operand.vmem [shape: f32[2,1,8], index: 1, kind: input, shape index: {}]
  %s2 = inlined_call_operand.vmem [shape: bf16[2,32,96], index: 2, kind: input, shape index: {}]
  %s3 = inlined_call_operand.vmem [shape: f32[2,1,96], index: 3, kind: input, shape index: {}]
  %s4 = inlined_call_operand.vmem [shape: bf16[2,32,32], index: 4, kind: input, shape index: {}]
  %s5 = inlined_call_operand.vmem [shape: f32[2,1,32], index: 5, kind: input, shape index: {}]
  %s6 = inlined_call_operand.vmem [shape: f32[2,1,32], index: 6, kind: input, shape index: {}]
  %s7 = inlined_call_operand.vmem [shape: f32[2,1,32], index: 7, kind: input, shape index: {}]
  %s8 = inlined_call_operand.vmem [shape: bf16[2,32,128], index: 8, kind: input, shape index: {}]
  %s9 = inlined_call_operand.vmem [shape: f32[2,1,128], index: 9, kind: input, shape index: {}]
  %s10 = inlined_call_operand.vmem [shape: bf16[2,128,32], index: 10, kind: input, shape index: {}]
  %s11 = inlined_call_operand.vmem [shape: f32[2,1,32], index: 11, kind: input, shape index: {}]
  %s12 = inlined_call_operand.vmem [shape: f32[2,1,32], index: 12, kind: input, shape index: {}]
  %s13 = inlined_call_operand.vmem [shape: f32[2,1,32], index: 13, kind: input, shape index: {}]
  %s14 = inlined_call_operand.vmem [shape: f32[2,8,32], index: 14, kind: output, shape index: {}, may-alias: {0,14}]
  %s15 = sld [smem:[#allocation0]]
  $region93: #{roberta_encoder_forward.1} parent=0
    _
  %s17 = ssub.s32 1, %s15
  %s18 = scalar_select 0, %s17, %s15
  loop: start=0, step=1, limit=6
  $region2: #{roberta_encoder_forward.1} parent=0 // loop_pre_header
    _
  $region3: #{roberta_encoder_forward.1} parent=0 // loop_header
    %s20 = sphi 0, %s24
    %p21 = scmp.ge.s32.totalorder %s20, 6
    %s27 = sphi 0, %s39
    %s28 = sphi 0, %s35
    %s29 = sphi 0, %s27
    %s30 = sphi 0, %s28
    %s31 = sphi 0, %s29
    %s32 = sphi 0, %s30
    %s42 = sphi 0, %s44
    %s45 = sphi 0, %s42
    %s46 = sphi 0, %s45
    %s62 = sphi 0, %s46
    %s68 = sphi 0, %s70
    %s71 = sphi 0, %s68
    %s72 = sphi 0, %s71
    %s88 = sphi 0, %s72
    %s94 = sphi 0, %s96
    %s97 = sphi 0, %s94
    %s98 = sphi 0, %s97
    %s114 = sphi 0, %s98
    %s120 = sphi 0, %s122
    %s123 = sphi 0, %s120
    %s124 = sphi 0, %s123
    %s140 = sphi 0, %s124
    %s146 = sphi 0, %s148
    %s149 = sphi 0, %s146
    %s150 = sphi 0, %s149
    %s166 = sphi 0, %s150
    %s172 = sphi 0, %s174
    %s175 = sphi 0, %s172
    %s176 = sphi 0, %s175
    %s192 = sphi 0, %s176
    %s198 = sphi 0, %s200
    %s201 = sphi 0, %s198
    %s202 = sphi 0, %s201
    %s218 = sphi 0, %s202
    %s224 = sphi 0, %s226
    %s227 = sphi 0, %s224
    %s228 = sphi 0, %s227
    %s244 = sphi 0, %s228
    %s250 = sphi 0, %s252
    %s253 = sphi 0, %s250
    %s254 = sphi 0, %s253
    %s270 = sphi 0, %s254
    %s276 = sphi 0, %s278
    %s279 = sphi 0, %s276
    %s280 = sphi 0, %s279
    %s296 = sphi 0, %s280
    %s302 = sphi 0, %s304
    %s305 = sphi 0, %s302
    %s306 = sphi 0, %s305
    %s322 = sphi 0, %s306
    %s328 = sphi 0, %s330
    %s331 = sphi 0, %s328
    %s332 = sphi 0, %s331
    %s348 = sphi 0, %s332
    %s354 = sphi 0, %s356
    %s357 = sphi 0, %s354
    %s358 = sphi 0, %s357
    %s374 = sphi 0, %s358
    %s380 = sphi 0, %s382
    %s383 = sphi 0, %s380
    %s384 = sphi 0, %s383
    %s400 = sphi 0, %s384
    %s406 = sphi 0, %s408
    %s409 = sphi 0, %s406
    %s410 = sphi 0, %s409
    %s426 = sphi 0, %s410
  $region4: #{roberta_encoder_forward.1} parent=0 // loop_header_branch
    %23 = sbr.rel (%p21) target = $region8
  $region5: #{roberta_encoder_forward.1} parent=0 // loop_body
    %s25 = ssub.s32 %s20, 1
    %s26 = ssub.s32 %s20, 2
    %s33 = sadd.s32 1, %s28
    %p34 = scmp.ge.s32.totalorder %s33, 2
    %s35 = scalar_select %p34, 0, %s33
    %s36 = sadd.s32 1, %s27
    %s37 = scalar_select %p34, %s36, %s27
    %p38 = scmp.ge.s32.totalorder %s37, 2
    %s39 = scalar_select %p38, 0, %s37
    %s40 = ssub.s32 %s27, %s39
    %p41 = scmp.eq.s32.totalorder %s40, 0
    %s43 = sadd.s32 %s42, 1
    %s44 = scalar_select %p41, %s42, %s43
    %p47 = pneg %p41
    %p48 = scmp.eq.s32.totalorder %s20, 3
    %p49 = por %p47, %p48
    %p50 = scmp.ne.s32.totalorder %s42, %s45
    %p51 = scmp.eq.s32.totalorder %s20, 0
    %p52 = por %p50, %p51
    %p53 = scmp.ne.s32.totalorder %s42, %s45
    %p54 = scmp.eq.s32.totalorder %s25, 3
    %p55 = por %p53, %p54
    %p56 = scmp.ne.s32.totalorder %s45, %s46
    %p57 = scmp.eq.s32.totalorder %s25, 0
    %p58 = por %p56, %p57
    %p59 = scmp.ne.s32.totalorder %s45, %s46
    %p60 = scmp.eq.s32.totalorder %s26, 3
    %p61 = por %p59, %p60
    %p63 = scmp.ne.s32.totalorder %s46, %s62
    %p64 = scmp.eq.s32.totalorder %s26, 0
    %p65 = por %p63, %p64
    %s66 = ssub.s32 %s27, %s39
    %p67 = scmp.eq.s32.totalorder %s66, 0
    %s69 = sadd.s32 %s68, 1
    %s70 = scalar_select %p67, %s68, %s69
    %p73 = pneg %p67
    %p74 = scmp.eq.s32.totalorder %s20, 3
    %p75 = por %p73, %p74
    %p76 = scmp.ne.s32.totalorder %s68, %s71
    %p77 = scmp.eq.s32.totalorder %s20, 0
    %p78 = por %p76, %p77
    %p79 = scmp.ne.s32.totalorder %s68, %s71
    %p80 = scmp.eq.s32.totalorder %s25, 3
    %p81 = por %p79, %p80
    %p82 = scmp.ne.s32.totalorder %s71, %s72
    %p83 = scmp.eq.s32.totalorder %s25, 0
    %p84 = por %p82, %p83
    %p85 = scmp.ne.s32.totalorder %s71, %s72
    %p86 = scmp.eq.s32.totalorder %s26, 3
    %p87 = por %p85, %p86
    %p89 = scmp.ne.s32.totalorder %s72, %s88
    %p90 = scmp.eq.s32.totalorder %s26, 0
    %p91 = por %p89, %p90
    %s92 = ssub.s32 %s28, %s35
    %p93 = scmp.eq.s32.totalorder %s92, 0
    %s95 = sadd.s32 %s94, 1
    %s96 = scalar_select %p93, %s94, %s95
    %p99 = pneg %p93
    %p100 = scmp.eq.s32.totalorder %s20, 3
    %p101 = por %p99, %p100
    %p102 = scmp.ne.s32.totalorder %s94, %s97
    %p103 = scmp.eq.s32.totalorder %s20, 0
    %p104 = por %p102, %p103
    %p105 = scmp.ne.s32.totalorder %s94, %s97
    %p106 = scmp.eq.s32.totalorder %s25, 3
    %p107 = por %p105, %p106
    %p108 = scmp.ne.s32.totalorder %s97, %s98
    %p109 = scmp.eq.s32.totalorder %s25, 0
    %p110 = por %p108, %p109
    %p111 = scmp.ne.s32.totalorder %s97, %s98
    %p112 = scmp.eq.s32.totalorder %s26, 3
    %p113 = por %p111, %p112
    %p115 = scmp.ne.s32.totalorder %s98, %s114
    %p116 = scmp.eq.s32.totalorder %s26, 0
    %p117 = por %p115, %p116
    %s118 = ssub.s32 %s28, %s35
    %p119 = scmp.eq.s32.totalorder %s118, 0
    %s121 = sadd.s32 %s120, 1
    %s122 = scalar_select %p119, %s120, %s121
    %p125 = pneg %p119
    %p126 = scmp.eq.s32.totalorder %s20, 3
    %p127 = por %p125, %p126
    %p128 = scmp.ne.s32.totalorder %s120, %s123
    %p129 = scmp.eq.s32.totalorder %s20, 0
    %p130 = por %p128, %p129
    %p131 = scmp.ne.s32.totalorder %s120, %s123
    %p132 = scmp.eq.s32.totalorder %s25, 3
    %p133 = por %p131, %p132
    %p134 = scmp.ne.s32.totalorder %s123, %s124
    %p135 = scmp.eq.s32.totalorder %s25, 0
    %p136 = por %p134, %p135
    %p137 = scmp.ne.s32.totalorder %s123, %s124
    %p138 = scmp.eq.s32.totalorder %s26, 3
    %p139 = por %p137, %p138
    %p141 = scmp.ne.s32.totalorder %s124, %s140
    %p142 = scmp.eq.s32.totalorder %s26, 0
    %p143 = por %p141, %p142
    %s144 = ssub.s32 %s28, %s35
    %p145 = scmp.eq.s32.totalorder %s144, 0
    %s147 = sadd.s32 %s146, 1
    %s148 = scalar_select %p145, %s146, %s147
    %p151 = pneg %p145
    %p152 = scmp.eq.s32.totalorder %s20, 3
    %p153 = por %p151, %p152
    %p154 = scmp.ne.s32.totalorder %s146, %s149
    %p155 = scmp.eq.s32.totalorder %s20, 0
    %p156 = por %p154, %p155
    %p157 = scmp.ne.s32.totalorder %s146, %s149
    %p158 = scmp.eq.s32.totalorder %s25, 3
    %p159 = por %p157, %p158
    %p160 = scmp.ne.s32.totalorder %s149, %s150
    %p161 = scmp.eq.s32.totalorder %s25, 0
    %p162 = por %p160, %p161
    %p163 = scmp.ne.s32.totalorder %s149, %s150
    %p164 = scmp.eq.s32.totalorder %s26, 3
    %p165 = por %p163, %p164
    %p167 = scmp.ne.s32.totalorder %s150, %s166
    %p168 = scmp.eq.s32.totalorder %s26, 0
    %p169 = por %p167, %p168
    %s170 = ssub.s32 %s28, %s35
    %p171 = scmp.eq.s32.totalorder %s170, 0
    %s173 = sadd.s32 %s172, 1
    %s174 = scalar_select %p171, %s172, %s173
    %p177 = pneg %p171
    %p178 = scmp.eq.s32.totalorder %s20, 3
    %p179 = por %p177, %p178
    %p180 = scmp.ne.s32.totalorder %s172, %s175
    %p181 = scmp.eq.s32.totalorder %s20, 0
    %p182 = por %p180, %p181
    %p183 = scmp.ne.s32.totalorder %s172, %s175
    %p184 = scmp.eq.s32.totalorder %s25, 3
    %p185 = por %p183, %p184
    %p186 = scmp.ne.s32.totalorder %s175, %s176
    %p187 = scmp.eq.s32.totalorder %s25, 0
    %p188 = por %p186, %p187
    %p189 = scmp.ne.s32.totalorder %s175, %s176
    %p190 = scmp.eq.s32.totalorder %s26, 3
    %p191 = por %p189, %p190
    %p193 = scmp.ne.s32.totalorder %s176, %s192
    %p194 = scmp.eq.s32.totalorder %s26, 0
    %p195 = por %p193, %p194
    %s196 = ssub.s32 %s28, %s35
    %p197 = scmp.eq.s32.totalorder %s196, 0
    %s199 = sadd.s32 %s198, 1
    %s200 = scalar_select %p197, %s198, %s199
    %p203 = pneg %p197
    %p204 = scmp.eq.s32.totalorder %s20, 3
    %p205 = por %p203, %p204
    %p206 = scmp.ne.s32.totalorder %s198, %s201
    %p207 = scmp.eq.s32.totalorder %s20, 0
    %p208 = por %p206, %p207
    %p209 = scmp.ne.s32.totalorder %s198, %s201
    %p210 = scmp.eq.s32.totalorder %s25, 3
    %p211 = por %p209, %p210
    %p212 = scmp.ne.s32.totalorder %s201, %s202
    %p213 = scmp.eq.s32.totalorder %s25, 0
    %p214 = por %p212, %p213
    %p215 = scmp.ne.s32.totalorder %s201, %s202
    %p216 = scmp.eq.s32.totalorder %s26, 3
    %p217 = por %p215, %p216
    %p219 = scmp.ne.s32.totalorder %s202, %s218
    %p220 = scmp.eq.s32.totalorder %s26, 0
    %p221 = por %p219, %p220
    %s222 = ssub.s32 %s28, %s35
    %p223 = scmp.eq.s32.totalorder %s222, 0
    %s225 = sadd.s32 %s224, 1
    %s226 = scalar_select %p223, %s224, %s225
    %p229 = pneg %p223
    %p230 = scmp.eq.s32.totalorder %s20, 3
    %p231 = por %p229, %p230
    %p232 = scmp.ne.s32.totalorder %s224, %s227
    %p233 = scmp.eq.s32.totalorder %s20, 0
    %p234 = por %p232, %p233
    %p235 = scmp.ne.s32.totalorder %s224, %s227
    %p236 = scmp.eq.s32.totalorder %s25, 3
    %p237 = por %p235, %p236
    %p238 = scmp.ne.s32.totalorder %s227, %s228
    %p239 = scmp.eq.s32.totalorder %s25, 0
    %p240 = por %p238, %p239
    %p241 = scmp.ne.s32.totalorder %s227, %s228
    %p242 = scmp.eq.s32.totalorder %s26, 3
    %p243 = por %p241, %p242
    %p245 = scmp.ne.s32.totalorder %s228, %s244
    %p246 = scmp.eq.s32.totalorder %s26, 0
    %p247 = por %p245, %p246
    %s248 = ssub.s32 %s28, %s35
    %p249 = scmp.eq.s32.totalorder %s248, 0
    %s251 = sadd.s32 %s250, 1
    %s252 = scalar_select %p249, %s250, %s251
    %p255 = pneg %p249
    %p256 = scmp.eq.s32.totalorder %s20, 3
    %p257 = por %p255, %p256
    %p258 = scmp.ne.s32.totalorder %s250, %s253
    %p259 = scmp.eq.s32.totalorder %s20, 0
    %p260 = por %p258, %p259
    %p261 = scmp.ne.s32.totalorder %s250, %s253
    %p262 = scmp.eq.s32.totalorder %s25, 3
    %p263 = por %p261, %p262
    %p264 = scmp.ne.s32.totalorder %s253, %s254
    %p265 = scmp.eq.s32.totalorder %s25, 0
    %p266 = por %p264, %p265
    %p267 = scmp.ne.s32.totalorder %s253, %s254
    %p268 = scmp.eq.s32.totalorder %s26, 3
    %p269 = por %p267, %p268
    %p271 = scmp.ne.s32.totalorder %s254, %s270
    %p272 = scmp.eq.s32.totalorder %s26, 0
    %p273 = por %p271, %p272
    %s274 = ssub.s32 %s28, %s35
    %p275 = scmp.eq.s32.totalorder %s274, 0
    %s277 = sadd.s32 %s276, 1
    %s278 = scalar_select %p275, %s276, %s277
    %p281 = pneg %p275
    %p282 = scmp.eq.s32.totalorder %s20, 3
    %p283 = por %p281, %p282
    %p284 = scmp.ne.s32.totalorder %s276, %s279
    %p285 = scmp.eq.s32.totalorder %s20, 0
    %p286 = por %p284, %p285
    %p287 = scmp.ne.s32.totalorder %s276, %s279
    %p288 = scmp.eq.s32.totalorder %s25, 3
    %p289 = por %p287, %p288
    %p290 = scmp.ne.s32.totalorder %s279, %s280
    %p291 = scmp.eq.s32.totalorder %s25, 0
    %p292 = por %p290, %p291
    %p293 = scmp.ne.s32.totalorder %s279, %s280
    %p294 = scmp.eq.s32.totalorder %s26, 3
    %p295 = por %p293, %p294
    %p297 = scmp.ne.s32.totalorder %s280, %s296
    %p298 = scmp.eq.s32.totalorder %s26, 0
    %p299 = por %p297, %p298
    %s300 = ssub.s32 %s28, %s35
    %p301 = scmp.eq.s32.totalorder %s300, 0
    %s303 = sadd.s32 %s302, 1
    %s304 = scalar_select %p301, %s302, %s303
    %p307 = pneg %p301
    %p308 = scmp.eq.s32.totalorder %s20, 3
    %p309 = por %p307, %p308
    %p310 = scmp.ne.s32.totalorder %s302, %s305
    %p311 = scmp.eq.s32.totalorder %s20, 0
    %p312 = por %p310, %p311
    %p313 = scmp.ne.s32.totalorder %s302, %s305
    %p314 = scmp.eq.s32.totalorder %s25, 3
    %p315 = por %p313, %p314
    %p316 = scmp.ne.s32.totalorder %s305, %s306
    %p317 = scmp.eq.s32.totalorder %s25, 0
    %p318 = por %p316, %p317
    %p319 = scmp.ne.s32.totalorder %s305, %s306
    %p320 = scmp.eq.s32.totalorder %s26, 3
    %p321 = por %p319, %p320
    %p323 = scmp.ne.s32.totalorder %s306, %s322
    %p324 = scmp.eq.s32.totalorder %s26, 0
    %p325 = por %p323, %p324
    %s326 = ssub.s32 %s28, %s35
    %p327 = scmp.eq.s32.totalorder %s326, 0
    %s329 = sadd.s32 %s328, 1
    %s330 = scalar_select %p327, %s328, %s329
    %p333 = pneg %p327
    %p334 = scmp.eq.s32.totalorder %s20, 3
    %p335 = por %p333, %p334
    %p336 = scmp.ne.s32.totalorder %s328, %s331
    %p337 = scmp.eq.s32.totalorder %s20, 0
    %p338 = por %p336, %p337
    %p339 = scmp.ne.s32.totalorder %s328, %s331
    %p340 = scmp.eq.s32.totalorder %s25, 3
    %p341 = por %p339, %p340
    %p342 = scmp.ne.s32.totalorder %s331, %s332
    %p343 = scmp.eq.s32.totalorder %s25, 0
    %p344 = por %p342, %p343
    %p345 = scmp.ne.s32.totalorder %s331, %s332
    %p346 = scmp.eq.s32.totalorder %s26, 3
    %p347 = por %p345, %p346
    %p349 = scmp.ne.s32.totalorder %s332, %s348
    %p350 = scmp.eq.s32.totalorder %s26, 0
    %p351 = por %p349, %p350
    %s352 = ssub.s32 %s28, %s35
    %p353 = scmp.eq.s32.totalorder %s352, 0
    %s355 = sadd.s32 %s354, 1
    %s356 = scalar_select %p353, %s354, %s355
    %p359 = pneg %p353
    %p360 = scmp.eq.s32.totalorder %s20, 3
    %p361 = por %p359, %p360
    %p362 = scmp.ne.s32.totalorder %s354, %s357
    %p363 = scmp.eq.s32.totalorder %s20, 0
    %p364 = por %p362, %p363
    %p365 = scmp.ne.s32.totalorder %s354, %s357
    %p366 = scmp.eq.s32.totalorder %s25, 3
    %p367 = por %p365, %p366
    %p368 = scmp.ne.s32.totalorder %s357, %s358
    %p369 = scmp.eq.s32.totalorder %s25, 0
    %p370 = por %p368, %p369
    %p371 = scmp.ne.s32.totalorder %s357, %s358
    %p372 = scmp.eq.s32.totalorder %s26, 3
    %p373 = por %p371, %p372
    %p375 = scmp.ne.s32.totalorder %s358, %s374
    %p376 = scmp.eq.s32.totalorder %s26, 0
    %p377 = por %p375, %p376
    %s378 = ssub.s32 %s28, %s35
    %p379 = scmp.eq.s32.totalorder %s378, 0
    %s381 = sadd.s32 %s380, 1
    %s382 = scalar_select %p379, %s380, %s381
    %p385 = pneg %p379
    %p386 = scmp.eq.s32.totalorder %s20, 3
    %p387 = por %p385, %p386
    %p388 = scmp.ne.s32.totalorder %s380, %s383
    %p389 = scmp.eq.s32.totalorder %s20, 0
    %p390 = por %p388, %p389
    %p391 = scmp.ne.s32.totalorder %s380, %s383
    %p392 = scmp.eq.s32.totalorder %s25, 3
    %p393 = por %p391, %p392
    %p394 = scmp.ne.s32.totalorder %s383, %s384
    %p395 = scmp.eq.s32.totalorder %s25, 0
    %p396 = por %p394, %p395
    %p397 = scmp.ne.s32.totalorder %s383, %s384
    %p398 = scmp.eq.s32.totalorder %s26, 3
    %p399 = por %p397, %p398
    %p401 = scmp.ne.s32.totalorder %s384, %s400
    %p402 = scmp.eq.s32.totalorder %s26, 0
    %p403 = por %p401, %p402
    %s404 = ssub.s32 %s27, %s39
    %p405 = scmp.eq.s32.totalorder %s404, 0
    %s407 = sadd.s32 %s406, 1
    %s408 = scalar_select %p405, %s406, %s407
    %p411 = pneg %p405
    %p412 = scmp.eq.s32.totalorder %s20, 3
    %p413 = por %p411, %p412
    %p414 = scmp.ne.s32.totalorder %s406, %s409
    %p415 = scmp.eq.s32.totalorder %s20, 0
    %p416 = por %p414, %p415
    %p417 = scmp.ne.s32.totalorder %s406, %s409
    %p418 = scmp.eq.s32.totalorder %s25, 3
    %p419 = por %p417, %p418
    %p420 = scmp.ne.s32.totalorder %s409, %s410
    %p421 = scmp.eq.s32.totalorder %s25, 0
    %p422 = por %p420, %p421
    %p423 = scmp.ne.s32.totalorder %s409, %s410
    %p424 = scmp.eq.s32.totalorder %s26, 3
    %p425 = por %p423, %p424
    %p427 = scmp.ne.s32.totalorder %s410, %s426
    %p428 = scmp.eq.s32.totalorder %s26, 0
    %p429 = por %p427, %p428
    %p430 = scmp.le.s32.totalorder 1, %s20
    %p431 = scmp.lt.s32.totalorder %s20, 5
    %p432 = pnand %p430, %p431
    %p433 = pneg %p432
    // Predicated region
    $region9: #{roberta_encoder_forward.1} parent=5 // pred_check
      _
    $region10: #{roberta_encoder_forward.1} parent=5 // pred_check_branch
      %435 = sbr.rel (%p432) target = $region12
    $region11: #{roberta_encoder_forward.1} parent=5 // pred_region
      %s436 = ssub.s32 %s20, 1
    $region12: #{roberta_encoder_forward.1} parent=5 // pred_fallthru
      _
    %p437 = scmp.lt.s32.totalorder %s20, 4
    // Predicated region
    $region13: #{roberta_encoder_forward.1} parent=5 // pred_check
      %p438 = pneg %p437
    $region14: #{roberta_encoder_forward.1} parent=5 // pred_check_branch
      %440 = sbr.rel (%p438) target = $region16
    $region15: #{roberta_encoder_forward.1} parent=5 // pred_region
      // Predicated region
      $region17: #{roberta_encoder_forward.1} parent=15 // pred_check
        %p441 = pneg %p52
      $region18: #{roberta_encoder_forward.1} parent=15 // pred_check_branch
        %443 = sbr.rel (%p441) target = $region20
      $region19: #{roberta_encoder_forward.1} parent=15 // pred_region
        %p444 = scmp.lt.s32.totalorder %s27, 1
        %s445 = scalar_select %p444, %s27, 1
        %s446 = smul.addr %s445, 8
        %s447 = scalar_lea.vmem %s0, %s446
      $region20: #{roberta_encoder_forward.1} parent=15 // pred_fallthru
        _
      // Predicated region
      $region21: #{roberta_encoder_forward.1} parent=15 // pred_check
        %p448 = pneg %p78
      $region22: #{roberta_encoder_forward.1} parent=15 // pred_check_branch
        %450 = sbr.rel (%p448) target = $region24
      $region23: #{roberta_encoder_forward.1} parent=15 // pred_region
        %p451 = scmp.lt.s32.totalorder %s27, 1
        %s452 = scalar_select %p451, %s27, 1
        %s453 = scalar_lea.vmem %s1, %s452
      $region24: #{roberta_encoder_forward.1} parent=15 // pred_fallthru
        _
      // Predicated region
      $region25: #{roberta_encoder_forward.1} parent=15 // pred_check
        %p454 = pneg %p104
      $region26: #{roberta_encoder_forward.1} parent=15 // pred_check_branch
        %456 = sbr.rel (%p454) target = $region28
      $region27: #{roberta_encoder_forward.1} parent=15 // pred_region
        %p457 = scmp.lt.s32.totalorder %s28, 1
        %s458 = scalar_select %p457, %s28, 1
        %s459 = smul.addr %s458, 4
        %s460 = smul.addr %s459, 4
        %s461 = scalar_lea.vmem %s2, %s460
      $region28: #{roberta_encoder_forward.1} parent=15 // pred_fallthru
        _
      // Predicated region
      $region29: #{roberta_encoder_forward.1} parent=15 // pred_check
        %p462 = pneg %p130
      $region30: #{roberta_encoder_forward.1} parent=15 // pred_check_branch
        %464 = sbr.rel (%p462) target = $region32
      $region31: #{roberta_encoder_forward.1} parent=15 // pred_region
        %p465 = scmp.lt.s32.totalorder %s28, 1
        %s466 = scalar_select %p465, %s28, 1
        %s467 = scalar_lea.vmem %s3, %s466
      $region32: #{roberta_encoder_forward.1} parent=15 // pred_fallthru
        _
      // Predicated region
      $region33: #{roberta_encoder_forward.1} parent=15 // pred_check
        %p468 = pneg %p156
      $region34: #{roberta_encoder_forward.1} parent=15 // pred_check_branch
        %470 = sbr.rel (%p468) target = $region36
      $region35: #{roberta_encoder_forward.1} parent=15 // pred_region
        %p471 = scmp.lt.s32.totalorder %s28, 1
        %s472 = scalar_select %p471, %s28, 1
        %s473 = smul.addr %s472, 4
        %s474 = smul.addr %s473, 4
        %s475 = scalar_lea.vmem %s4, %s474
      $region36: #{roberta_encoder_forward.1} parent=15 // pred_fallthru
        _
      // Predicated region
      $region37: #{roberta_encoder_forward.1} parent=15 // pred_check
        %p476 = pneg %p182
      $region38: #{roberta_encoder_forward.1} parent=15 // pred_check_branch
        %478 = sbr.rel (%p476) target = $region40
      $region39: #{roberta_encoder_forward.1} parent=15 // pred_region
        %p479 = scmp.lt.s32.totalorder %s28, 1
        %s480 = scalar_select %p479, %s28, 1
        %s481 = scalar_lea.vmem %s5, %s480
      $region40: #{roberta_encoder_forward.1} parent=15 // pred_fallthru
        _
      // Predicated region
      $region41: #{roberta_encoder_forward.1} parent=15 // pred_check
        %p482 = pneg %p208
      $region42: #{roberta_encoder_forward.1} parent=15 // pred_check_branch
        %484 = sbr.rel (%p482) target = $region44
      $region43: #{roberta_encoder_forward.1} parent=15 // pred_region
        %p485 = scmp.lt.s32.totalorder %s28, 1
        %s486 = scalar_select %p485, %s28, 1
        %s487 = scalar_lea.vmem %s6, %s486
      $region44: #{roberta_encoder_forward.1} parent=15 // pred_fallthru
        _
      // Predicated region
      $region45: #{roberta_encoder_forward.1} parent=15 // pred_check
        %p488 = pneg %p234
      $region46: #{roberta_encoder_forward.1} parent=15 // pred_check_branch
        %490 = sbr.rel (%p488) target = $region48
      $region47: #{roberta_encoder_forward.1} parent=15 // pred_region
        %p491 = scmp.lt.s32.totalorder %s28, 1
        %s492 = scalar_select %p491, %s28, 1
        %s493 = scalar_lea.vmem %s7, %s492
      $region48: #{roberta_encoder_forward.1} parent=15 // pred_fallthru
        _
      // Predicated region
      $region49: #{roberta_encoder_forward.1} parent=15 // pred_check
        %p494 = pneg %p260
      $region50: #{roberta_encoder_forward.1} parent=15 // pred_check_branch
        %496 = sbr.rel (%p494) target = $region52
      $region51: #{roberta_encoder_forward.1} parent=15 // pred_region
        %p497 = scmp.lt.s32.totalorder %s28, 1
        %s498 = scalar_select %p497, %s28, 1
        %s499 = smul.addr %s498, 4
        %s500 = smul.addr %s499, 4
        %s501 = scalar_lea.vmem %s8, %s500
      $region52: #{roberta_encoder_forward.1} parent=15 // pred_fallthru
        _
      // Predicated region
      $region53: #{roberta_encoder_forward.1} parent=15 // pred_check
        %p502 = pneg %p286
      $region54: #{roberta_encoder_forward.1} parent=15 // pred_check_branch
        %504 = sbr.rel (%p502) target = $region56
      $region55: #{roberta_encoder_forward.1} parent=15 // pred_region
        %p505 = scmp.lt.s32.totalorder %s28, 1
        %s506 = scalar_select %p505, %s28, 1
        %s507 = scalar_lea.vmem %s9, %s506
      $region56: #{roberta_encoder_forward.1} parent=15 // pred_fallthru
        _
      // Predicated region
      $region57: #{roberta_encoder_forward.1} parent=15 // pred_check
        %p508 = pneg %p312
      $region58: #{roberta_encoder_forward.1} parent=15 // pred_check_branch
        %510 = sbr.rel (%p508) target = $region60
      $region59: #{roberta_encoder_forward.1} parent=15 // pred_region
        %p511 = scmp.lt.s32.totalorder %s28, 1
        %s512 = scalar_select %p511, %s28, 1
        %s513 = smul.addr %s512, 16
        %s514 = smul.addr %s513, 4
        %s515 = scalar_lea.vmem %s10, %s514
      $region60: #{roberta_encoder_forward.1} parent=15 // pred_fallthru
        _
      // Predicated region
      $region61: #{roberta_encoder_forward.1} parent=15 // pred_check
        %p516 = pneg %p338
      $region62: #{roberta_encoder_forward.1} parent=15 // pred_check_branch
        %518 = sbr.rel (%p516) target = $region64
      $region63: #{roberta_encoder_forward.1} parent=15 // pred_region
        %p519 = scmp.lt.s32.totalorder %s28, 1
        %s520 = scalar_select %p519, %s28, 1
        %s521 = scalar_lea.vmem %s11, %s520
      $region64: #{roberta_encoder_forward.1} parent=15 // pred_fallthru
        _
      // Predicated region
      $region65: #{roberta_encoder_forward.1} parent=15 // pred_check
        %p522 = pneg %p364
      $region66: #{roberta_encoder_forward.1} parent=15 // pred_check_branch
        %524 = sbr.rel (%p522) target = $region68
      $region67: #{roberta_encoder_forward.1} parent=15 // pred_region
        %p525 = scmp.lt.s32.totalorder %s28, 1
        %s526 = scalar_select %p525, %s28, 1
        %s527 = scalar_lea.vmem %s12, %s526
      $region68: #{roberta_encoder_forward.1} parent=15 // pred_fallthru
        _
      // Predicated region
      $region69: #{roberta_encoder_forward.1} parent=15 // pred_check
        %p528 = pneg %p390
      $region70: #{roberta_encoder_forward.1} parent=15 // pred_check_branch
        %530 = sbr.rel (%p528) target = $region72
      $region71: #{roberta_encoder_forward.1} parent=15 // pred_region
        %p531 = scmp.lt.s32.totalorder %s28, 1
        %s532 = scalar_select %p531, %s28, 1
        %s533 = scalar_lea.vmem %s13, %s532
      $region72: #{roberta_encoder_forward.1} parent=15 // pred_fallthru
        _
    $region16: #{roberta_encoder_forward.1} parent=5 // pred_fallthru
      _
    %p534 = scmp.le.s32.totalorder 1, %s20
    %p535 = scmp.lt.s32.totalorder %s20, 5
    %p536 = pnand %p534, %p535
    %p537 = pneg %p536
    // Predicated region
    $region73: #{roberta_encoder_forward.1} parent=5 // pred_check
      _
    $region74: #{roberta_encoder_forward.1} parent=5 // pred_check_branch
      %539 = sbr.rel (%p536) target = $region76
    $region75: #{roberta_encoder_forward.1} parent=5 // pred_region
      %s540 = ssub.s32 %s20, 1
      %p541 = scmp.lt.s32.totalorder %s29, 1
      %s542 = scalar_select %p541, %s29, 1
      %s543 = smul.addr %s542, 8
      %s544 = scalar_lea.vmem %s0, %s543
      %p545 = pneg %p58
      %p546 = pneg %p55
      %p547 = scmp.lt.s32.totalorder %s29, 1
      %s548 = scalar_select %p547, %s29, 1
      %s549 = scalar_lea.vmem %s1, %s548
      %p550 = pneg %p84
      %p551 = pneg %p81
      %p552 = scmp.lt.s32.totalorder %s30, 1
      %s553 = scalar_select %p552, %s30, 1
      %s554 = smul.addr %s553, 4
      %s555 = smul.addr %s554, 4
      %s556 = scalar_lea.vmem %s2, %s555
      %p557 = pneg %p110
      %p558 = pneg %p107
      %p559 = scmp.lt.s32.totalorder %s30, 1
      %s560 = scalar_select %p559, %s30, 1
      %s561 = scalar_lea.vmem %s3, %s560
      %p562 = pneg %p136
      %p563 = pneg %p133
      %p564 = scmp.lt.s32.totalorder %s30, 1
      %s565 = scalar_select %p564, %s30, 1
      %s566 = smul.addr %s565, 4
      %s567 = smul.addr %s566, 4
      %s568 = scalar_lea.vmem %s4, %s567
      %p569 = pneg %p162
      %p570 = pneg %p159
      %p571 = scmp.lt.s32.totalorder %s30, 1
      %s572 = scalar_select %p571, %s30, 1
      %s573 = scalar_lea.vmem %s5, %s572
      %p574 = pneg %p188
      %p575 = pneg %p185
      %p576 = scmp.lt.s32.totalorder %s30, 1
      %s577 = scalar_select %p576, %s30, 1
      %s578 = scalar_lea.vmem %s6, %s577
      %p579 = pneg %p214
      %p580 = pneg %p211
      %p581 = scmp.lt.s32.totalorder %s30, 1
      %s582 = scalar_select %p581, %s30, 1
      %s583 = scalar_lea.vmem %s7, %s582
      %p584 = pneg %p240
      %p585 = pneg %p237
      %p586 = scmp.lt.s32.totalorder %s30, 1
      %s587 = scalar_select %p586, %s30, 1
      %s588 = smul.addr %s587, 4
      %s589 = smul.addr %s588, 4
      %s590 = scalar_lea.vmem %s8, %s589
      %p591 = pneg %p266
      %p592 = pneg %p263
      %p593 = scmp.lt.s32.totalorder %s30, 1
      %s594 = scalar_select %p593, %s30, 1
      %s595 = scalar_lea.vmem %s9, %s594
      %p596 = pneg %p292
      %p597 = pneg %p289
      %p598 = scmp.lt.s32.totalorder %s30, 1
      %s599 = scalar_select %p598, %s30, 1
      %s600 = smul.addr %s599, 16
      %s601 = smul.addr %s600, 4
      %s602 = scalar_lea.vmem %s10, %s601
      %p603 = pneg %p318
      %p604 = pneg %p315
      %p605 = scmp.lt.s32.totalorder %s30, 1
      %s606 = scalar_select %p605, %s30, 1
      %s607 = scalar_lea.vmem %s11, %s606
      %p608 = pneg %p344
      %p609 = pneg %p341
      %p610 = scmp.lt.s32.totalorder %s30, 1
      %s611 = scalar_select %p610, %s30, 1
      %s612 = scalar_lea.vmem %s12, %s611
      %p613 = pneg %p370
      %p614 = pneg %p367
      %p615 = scmp.lt.s32.totalorder %s30, 1
      %s616 = scalar_select %p615, %s30, 1
      %s617 = scalar_lea.vmem %s13, %s616
      %p618 = pneg %p396
      %p619 = pneg %p393
      %p620 = pneg %p422
      %p621 = pneg %p419
      %p622 = scmp.lt.s32.totalorder %s29, 1
      %s623 = scalar_select %p622, %s29, 1
      %s624 = smul.addr %s623, 8
      %s625 = scalar_lea.vmem %s14, %s624
      %p626 = scmp.lt.s32.totalorder %s29, 1
      %s627 = scalar_select %p626, %s29, 1
      %s628 = smul.addr %s627, 8
      %s629 = scalar_lea.vmem %s0, %s628
      %p630 = scmp.lt.s32.totalorder %s29, 1
      %s631 = scalar_select %p630, %s29, 1
      %s632 = scalar_lea.vmem %s1, %s631
      %p633 = scmp.lt.s32.totalorder %s30, 1
      %s634 = scalar_select %p633, %s30, 1
      %s635 = smul.addr %s634, 4
      %s636 = smul.addr %s635, 4
      %s637 = scalar_lea.vmem %s2, %s636
      %p638 = scmp.lt.s32.totalorder %s30, 1
      %s639 = scalar_select %p638, %s30, 1
      %s640 = scalar_lea.vmem %s3, %s639
      %p641 = scmp.lt.s32.totalorder %s30, 1
      %s642 = scalar_select %p641, %s30, 1
      %s643 = smul.addr %s642, 4
      %s644 = smul.addr %s643, 4
      %s645 = scalar_lea.vmem %s4, %s644
      %p646 = scmp.lt.s32.totalorder %s30, 1
      %s647 = scalar_select %p646, %s30, 1
      %s648 = scalar_lea.vmem %s5, %s647
      %p649 = scmp.lt.s32.totalorder %s30, 1
      %s650 = scalar_select %p649, %s30, 1
      %s651 = scalar_lea.vmem %s6, %s650
      %p652 = scmp.lt.s32.totalorder %s30, 1
      %s653 = scalar_select %p652, %s30, 1
      %s654 = scalar_lea.vmem %s7, %s653
      %p655 = scmp.lt.s32.totalorder %s30, 1
      %s656 = scalar_select %p655, %s30, 1
      %s657 = smul.addr %s656, 4
      %s658 = smul.addr %s657, 4
      %s659 = scalar_lea.vmem %s8, %s658
      %p660 = scmp.lt.s32.totalorder %s30, 1
      %s661 = scalar_select %p660, %s30, 1
      %s662 = scalar_lea.vmem %s9, %s661
      %p663 = scmp.lt.s32.totalorder %s30, 1
      %s664 = scalar_select %p663, %s30, 1
      %s665 = smul.addr %s664, 16
      %s666 = smul.addr %s665, 4
      %s667 = scalar_lea.vmem %s10, %s666
      %p668 = scmp.lt.s32.totalorder %s30, 1
      %s669 = scalar_select %p668, %s30, 1
      %s670 = scalar_lea.vmem %s11, %s669
      %p671 = scmp.lt.s32.totalorder %s30, 1
      %s672 = scalar_select %p671, %s30, 1
      %s673 = scalar_lea.vmem %s12, %s672
      %p674 = scmp.lt.s32.totalorder %s30, 1
      %s675 = scalar_select %p674, %s30, 1
      %s676 = scalar_lea.vmem %s13, %s675
      %p677 = scmp.lt.s32.totalorder %s29, 1
      %s678 = scalar_select %p677, %s29, 1
      %s679 = smul.addr %s678, 8
      %s680 = scalar_lea.vmem %s14, %s679
      %p682 = scmp.eq.s32.totalorder %s30, 0
      // Predicated region
      $region77: #{roberta_encoder_forward.1} parent=75 // pred_check
        %p683 = pneg %p682
      $region78: #{roberta_encoder_forward.1} parent=75 // pred_check_branch
        %685 = sbr.rel (%p683) target = $region80
      $region79: #{roberta_encoder_forward.1} parent=75 // pred_region
        %v686 = vld [vmem:[%s629] sm:$0xff]
        %vm687 = vcmask 261120
        %688 = vst.msk [vmem:[%s680] sm:$0xff] %vm687, %v686
      $region80: #{roberta_encoder_forward.1} parent=75 // pred_fallthru
        _
      %v689 = vld [vmem:[%s680] sm:$0xff]
      %v690 = vpack.c.bf16 %v689, %v689
      %v691 = vld [vmem:[%s632] sm:$0x1]
      %v692 = vld [vmem:[%s637] sm:$0xf]
      %v693 = vld [vmem:[%s637 + $0x4] sm:$0xf]
      %v694 = vld [vmem:[%s637 + $0x8] sm:$0xf]
      %v695 = vld [vmem:[%s637 + $0xc] sm:$0xf]
      %v696 = vld [vmem:[%s640] sm:$0x1]
      %v698 = vlaneseq
      %v699 = vshrl.u32 %v698, 7
      %v700 = vsub.s32 0, %v699
      %v701 = vrot.slane %v696, %v700
      %v707 = vunpack.c.l.b16 %v692
      %v708 = vunpack.c.l.b16 %v693
      %v709 = vunpack.c.l.b16 %v694
      %v710 = vunpack.c.l.b16 %v695
      %v711 = vpack.c.b16 %v708, %v707
      %v712 = vpack.c.b16 %v710, %v709
      %vm715 = vcmask 261120
      %v717 = vsel %vm715, %v690, 0
      %719 = vmatprep.subr.bf16.mxu0 0
      %720 = vmatpush1.bf16.msra.mxu0 %v711
      %721 = vmatprep.subr.bf16.mxu0 0
      %722 = vmatpush1.bf16.msra.mxu0 %v712
      %723 = vmatprep.subr.bf16.mxu0 0
      %724 = vmatpush1.bf16.msra.mxu0 0
      %725 = vmatprep.subr.bf16.mxu0 0
      %726 = vmatpush1.bf16.msra.mxu0 0
      %727 = vmatprep.subr.bf16.mxu0 0
      %728 = vmatpush1.bf16.msra.mxu0 0
      %729 = vmatprep.subr.bf16.mxu0 0
      %730 = vmatpush1.bf16.msra.mxu0 0
      %731 = vmatprep.subr.bf16.mxu0 0
      %732 = vmatpush1.bf16.msra.mxu0 0
      %733 = vmatprep.subr.bf16.mxu0 0
      %734 = vmatpush1.bf16.msra.mxu0 0
      %735 = vmatprep.subr.bf16.mxu0 0
      %736 = vmatpush1.bf16.msra.mxu0 0
      %737 = vmatprep.subr.bf16.mxu0 0
      %738 = vmatpush1.bf16.msra.mxu0 0
      %739 = vmatprep.subr.bf16.mxu0 0
      %740 = vmatpush1.bf16.msra.mxu0 0
      %741 = vmatprep.subr.bf16.mxu0 0
      %742 = vmatpush1.bf16.msra.mxu0 0
      %743 = vmatprep.subr.bf16.mxu0 0
      %744 = vmatpush1.bf16.msra.mxu0 0
      %745 = vmatprep.subr.bf16.mxu0 0
      %746 = vmatpush1.bf16.msra.mxu0 0
      %747 = vmatprep.subr.bf16.mxu0 0
      %748 = vmatpush1.bf16.msra.mxu0 0
      %749 = vmatprep.subr.bf16.mxu0 0
      %750 = vmatpush1.bf16.msra.mxu0 0
      %751 = vmatprep.mubr.bf16.mxu0 0
      %752 = vmatmul.mubr.bf16.gmra.mrb[0].mxu0 %v717
      %v753 = vpop.f32.mrb[0].mxu0
      %v754 = vadd.f32 %v701, %v753
      %v755 = vpop.f32.mrb[0].mxu0
      %v756 = vpop.f32.mrb[0].mxu0
      %v757 = vpop.f32.mrb[0].mxu0
      %758 = vdwg.mxu0
      %v759 = vpack.c.bf16 %v754, %v754
      %v761 = vlaneseq
      %v762 = vshrl.u32 %v761, 7
      %v763 = vsub.s32 0, %v762
      %v764 = vrot.slane %v691, %v763
      %767 = vrot.lane.b32.xlu0 %v759, 96
      %v768 = vpop.permute.xlu0 %767
      %vm769 = vcmask 64512
      %v771 = vsel %vm769, %v759, 0
      %v774 = vsel %vm769, %v768, 0
      %776 = vmatprep.subr.bf16.mxu0 0
      %777 = vmatpush1.bf16.xpose.msra.mxu0 %v774
      %778 = vmatprep.subr.bf16.mxu0 0
      %779 = vmatpush1.bf16.xpose.msra.mxu0 0
      %780 = vmatprep.subr.bf16.mxu0 0
      %781 = vmatpush1.bf16.xpose.msra.mxu0 0
      %782 = vmatprep.subr.bf16.mxu0 0
      %783 = vmatpush1.bf16.xpose.msra.mxu0 0
      %784 = vmatprep.subr.bf16.mxu0 0
      %785 = vmatpush1.bf16.xpose.msra.mxu0 0
      %786 = vmatprep.subr.bf16.mxu0 0
      %787 = vmatpush1.bf16.xpose.msra.mxu0 0
      %788 = vmatprep.subr.bf16.mxu0 0
      %789 = vmatpush1.bf16.xpose.msra.mxu0 0
      %790 = vmatprep.subr.bf16.mxu0 0
      %791 = vmatpush1.bf16.xpose.msra.mxu0 0
      %792 = vmatprep.subr.bf16.mxu0 0
      %793 = vmatpush1.bf16.xpose.msra.mxu0 0
      %794 = vmatprep.subr.bf16.mxu0 0
      %795 = vmatpush1.bf16.xpose.msra.mxu0 0
      %796 = vmatprep.subr.bf16.mxu0 0
      %797 = vmatpush1.bf16.xpose.msra.mxu0 0
      %798 = vmatprep.subr.bf16.mxu0 0
      %799 = vmatpush1.bf16.xpose.msra.mxu0 0
      %800 = vmatprep.subr.bf16.mxu0 0
      %801 = vmatpush1.bf16.xpose.msra.mxu0 0
      %802 = vmatprep.subr.bf16.mxu0 0
      %803 = vmatpush1.bf16.xpose.msra.mxu0 0
      %804 = vmatprep.subr.bf16.mxu0 0
      %805 = vmatpush1.bf16.xpose.msra.mxu0 0
      %806 = vmatprep.subr.bf16.mxu0 0
      %807 = vmatpush1.bf16.xpose.msra.mxu0 0
      %808 = vmatprep.mubr.bf16.mxu0 0
      %809 = vmatmul.mubr.bf16.gmra.mrb[0].mxu0 %v771
      %v810 = vpop.f32.mrb[0].mxu0
      %v811 = vadd.f32 %v764, %v810
      %v812 = vpop.f32.mrb[0].mxu0
      %v813 = vpop.f32.mrb[0].mxu0
      %v814 = vpop.f32.mrb[0].mxu0
      %815 = vdwg.mxu0
      %v816 = vsel %vm769, %v811, -inf
      %817 = vmax.xlane.f32.xlu0 %v816
      %v818 = vpop.xlane.xlu0 %817
      %v819 = vsub.f32 %v811, %v818
      %v820 = vmul.f32 %v819, 1.442695
      %v821 = vpow.pop %v820
      %v822 = vsel %vm769, %v821, 0.0
      %823 = vadd.xlane.f32.xlu0 %v822
      %v824 = vpop.xlane.xlu0 %823
      %v825 = vrcp.pop %v824
      %v826 = vmul.f32 %v821, %v825
      %v827 = vpack.c.bf16 %v826, %v826
      %828 = vrot.lane.b32.xlu0 %v759, 64
      %v829 = vpop.permute.xlu0 %828
      %v831 = vsel %vm769, %v827, 0
      %vm833 = vcmask 1043456
      %v835 = vsel %vm833, %v829, 0
      %837 = vmatprep.subr.bf16.mxu0 0
      %838 = vmatpush1.bf16.msra.mxu0 %v835
      %839 = vmatprep.subr.bf16.mxu0 0
      %840 = vmatpush1.bf16.msra.mxu0 0
      %841 = vmatprep.subr.bf16.mxu0 0
      %842 = vmatpush1.bf16.msra.mxu0 0
      %843 = vmatprep.subr.bf16.mxu0 0
      %844 = vmatpush1.bf16.msra.mxu0 0
      %845 = vmatprep.subr.bf16.mxu0 0
      %846 = vmatpush1.bf16.msra.mxu0 0
      %847 = vmatprep.subr.bf16.mxu0 0
      %848 = vmatpush1.bf16.msra.mxu0 0
      %849 = vmatprep.subr.bf16.mxu0 0
      %850 = vmatpush1.bf16.msra.mxu0 0
      %851 = vmatprep.subr.bf16.mxu0 0
      %852 = vmatpush1.bf16.msra.mxu0 0
      %853 = vmatprep.subr.bf16.mxu0 0
      %854 = vmatpush1.bf16.msra.mxu0 0
      %855 = vmatprep.subr.bf16.mxu0 0
      %856 = vmatpush1.bf16.msra.mxu0 0
      %857 = vmatprep.subr.bf16.mxu0 0
      %858 = vmatpush1.bf16.msra.mxu0 0
      %859 = vmatprep.subr.bf16.mxu0 0
      %860 = vmatpush1.bf16.msra.mxu0 0
      %861 = vmatprep.subr.bf16.mxu0 0
      %862 = vmatpush1.bf16.msra.mxu0 0
      %863 = vmatprep.subr.bf16.mxu0 0
      %864 = vmatpush1.bf16.msra.mxu0 0
      %865 = vmatprep.subr.bf16.mxu0 0
      %866 = vmatpush1.bf16.msra.mxu0 0
      %867 = vmatprep.subr.bf16.mxu0 0
      %868 = vmatpush1.bf16.msra.mxu0 0
      %869 = vmatprep.mubr.bf16.mxu0 0
      %870 = vmatmul.mubr.bf16.gmra.mrb[0].mxu0 %v831
      %v871 = vpop.f32.mrb[0].mxu0
      %v872 = vadd.f32 0.0, %v871
      %v873 = vpop.f32.mrb[0].mxu0
      %v874 = vpop.f32.mrb[0].mxu0
      %v875 = vpop.f32.mrb[0].mxu0
      %876 = vdwg.mxu0
      %v877 = vpack.c.bf16 %v872, %v872
      %vm878 = vcmask 60416
      %879 = vst.msk [vmem:[#allocation2] sm:$0xf] %vm878, %v877
      %880 = vrot.lane.b32.xlu0 %v759, 120
      %v881 = vpop.permute.xlu0 %880
      %882 = vrot.lane.b32.xlu0 %v759, 88
      %v883 = vpop.permute.xlu0 %882
      %v885 = vsel %vm769, %v881, 0
      %v888 = vsel %vm769, %v883, 0
      %890 = vmatprep.subr.bf16.mxu0 0
      %891 = vmatpush1.bf16.xpose.msra.mxu0 %v888
      %892 = vmatprep.subr.bf16.mxu0 0
      %893 = vmatpush1.bf16.xpose.msra.mxu0 0
      %894 = vmatprep.subr.bf16.mxu0 0
      %895 = vmatpush1.bf16.xpose.msra.mxu0 0
      %896 = vmatprep.subr.bf16.mxu0 0
      %897 = vmatpush1.bf16.xpose.msra.mxu0 0
      %898 = vmatprep.subr.bf16.mxu0 0
      %899 = vmatpush1.bf16.xpose.msra.mxu0 0
      %900 = vmatprep.subr.bf16.mxu0 0
      %901 = vmatpush1.bf16.xpose.msra.mxu0 0
      %902 = vmatprep.subr.bf16.mxu0 0
      %903 = vmatpush1.bf16.xpose.msra.mxu0 0
      %904 = vmatprep.subr.bf16.mxu0 0
      %905 = vmatpush1.bf16.xpose.msra.mxu0 0
      %906 = vmatprep.subr.bf16.mxu0 0
      %907 = vmatpush1.bf16.xpose.msra.mxu0 0
      %908 = vmatprep.subr.bf16.mxu0 0
      %909 = vmatpush1.bf16.xpose.msra.mxu0 0
      %910 = vmatprep.subr.bf16.mxu0 0
      %911 = vmatpush1.bf16.xpose.msra.mxu0 0
      %912 = vmatprep.subr.bf16.mxu0 0
      %913 = vmatpush1.bf16.xpose.msra.mxu0 0
      %914 = vmatprep.subr.bf16.mxu0 0
      %915 = vmatpush1.bf16.xpose.msra.mxu0 0
      %916 = vmatprep.subr.bf16.mxu0 0
      %917 = vmatpush1.bf16.xpose.msra.mxu0 0
      %918 = vmatprep.subr.bf16.mxu0 0
      %919 = vmatpush1.bf16.xpose.msra.mxu0 0
      %920 = vmatprep.subr.bf16.mxu0 0
      %921 = vmatpush1.bf16.xpose.msra.mxu0 0
      %922 = vmatprep.mubr.bf16.mxu0 0
      %923 = vmatmul.mubr.bf16.gmra.mrb[0].mxu0 %v885
      %v924 = vpop.f32.mrb[0].mxu0
      %v925 = vadd.f32 %v764, %v924
      %v926 = vpop.f32.mrb[0].mxu0
      %v927 = vpop.f32.mrb[0].mxu0
      %v928 = vpop.f32.mrb[0].mxu0
      %929 = vdwg.mxu0
      %v930 = vsel %vm769, %v925, -inf
      %931 = vmax.xlane.f32.xlu0 %v930
      %v932 = vpop.xlane.xlu0 %931
      %v933 = vsub.f32 %v925, %v932
      %v934 = vmul.f32 %v933, 1.442695
      %v935 = vpow.pop %v934
      %v936 = vsel %vm769, %v935, 0.0
      %937 = vadd.xlane.f32.xlu0 %v936
      %v938 = vpop.xlane.xlu0 %937
      %v939 = vrcp.pop %v938
      %v940 = vmul.f32 %v935, %v939
      %v941 = vpack.c.bf16 %v940, %v940
      %942 = vrot.lane.b32.xlu0 %v759, 56
      %v943 = vpop.permute.xlu0 %942
      %v945 = vsel %vm769, %v941, 0
      %v948 = vsel %vm833, %v943, 0
      %950 = vmatprep.subr.bf16.mxu0 0
      %951 = vmatpush1.bf16.msra.mxu0 %v948
      %952 = vmatprep.subr.bf16.mxu0 0
      %953 = vmatpush1.bf16.msra.mxu0 0
      %954 = vmatprep.subr.bf16.mxu0 0
      %955 = vmatpush1.bf16.msra.mxu0 0
      %956 = vmatprep.subr.bf16.mxu0 0
      %957 = vmatpush1.bf16.msra.mxu0 0
      %958 = vmatprep.subr.bf16.mxu0 0
      %959 = vmatpush1.bf16.msra.mxu0 0
      %960 = vmatprep.subr.bf16.mxu0 0
      %961 = vmatpush1.bf16.msra.mxu0 0
      %962 = vmatprep.subr.bf16.mxu0 0
      %963 = vmatpush1.bf16.msra.mxu0 0
      %964 = vmatprep.subr.bf16.mxu0 0
      %965 = vmatpush1.bf16.msra.mxu0 0
      %966 = vmatprep.subr.bf16.mxu0 0
      %967 = vmatpush1.bf16.msra.mxu0 0
      %968 = vmatprep.subr.bf16.mxu0 0
      %969 = vmatpush1.bf16.msra.mxu0 0
      %970 = vmatprep.subr.bf16.mxu0 0
      %971 = vmatpush1.bf16.msra.mxu0 0
      %972 = vmatprep.subr.bf16.mxu0 0
      %973 = vmatpush1.bf16.msra.mxu0 0
      %974 = vmatprep.subr.bf16.mxu0 0
      %975 = vmatpush1.bf16.msra.mxu0 0
      %976 = vmatprep.subr.bf16.mxu0 0
      %977 = vmatpush1.bf16.msra.mxu0 0
      %978 = vmatprep.subr.bf16.mxu0 0
      %979 = vmatpush1.bf16.msra.mxu0 0
      %980 = vmatprep.subr.bf16.mxu0 0
      %981 = vmatpush1.bf16.msra.mxu0 0
      %982 = vmatprep.mubr.bf16.mxu0 0
      %983 = vmatmul.mubr.bf16.gmra.mrb[0].mxu0 %v945
      %v984 = vpop.f32.mrb[0].mxu0
      %v985 = vadd.f32 0.0, %v984
      %v986 = vpop.f32.mrb[0].mxu0
      %v987 = vpop.f32.mrb[0].mxu0
      %v988 = vpop.f32.mrb[0].mxu0
      %989 = vdwg.mxu0
      %v990 = vpack.c.bf16 %v985, %v985
      %v992 = vunpack.c.l.b16 %v990
      %v993 = vpack.c.b16 %v992, %v992
      %994 = vrot.lane.b32.xlu0 %v993, 8
      %v995 = vpop.permute.xlu0 %994
      %vm997 = vcmask 126016
      %998 = vst.msk [vmem:[#allocation2] sm:$0xf] %vm997, %v995
      %999 = vrot.lane.b32.xlu0 %v759, 112
      %v1000 = vpop.permute.xlu0 %999
      %1001 = vrot.lane.b32.xlu0 %v759, 80
      %v1002 = vpop.permute.xlu0 %1001
      %v1004 = vsel %vm769, %v1000, 0
      %v1007 = vsel %vm769, %v1002, 0
      %1009 = vmatprep.subr.bf16.mxu0 0
      %1010 = vmatpush1.bf16.xpose.msra.mxu0 %v1007
      %1011 = vmatprep.subr.bf16.mxu0 0
      %1012 = vmatpush1.bf16.xpose.msra.mxu0 0
      %1013 = vmatprep.subr.bf16.mxu0 0
      %1014 = vmatpush1.bf16.xpose.msra.mxu0 0
      %1015 = vmatprep.subr.bf16.mxu0 0
      %1016 = vmatpush1.bf16.xpose.msra.mxu0 0
      %1017 = vmatprep.subr.bf16.mxu0 0
      %1018 = vmatpush1.bf16.xpose.msra.mxu0 0
      %1019 = vmatprep.subr.bf16.mxu0 0
      %1020 = vmatpush1.bf16.xpose.msra.mxu0 0
      %1021 = vmatprep.subr.bf16.mxu0 0
      %1022 = vmatpush1.bf16.xpose.msra.mxu0 0
      %1023 = vmatprep.subr.bf16.mxu0 0
      %1024 = vmatpush1.bf16.xpose.msra.mxu0 0
      %1025 = vmatprep.subr.bf16.mxu0 0
      %1026 = vmatpush1.bf16.xpose.msra.mxu0 0
      %1027 = vmatprep.subr.bf16.mxu0 0
      %1028 = vmatpush1.bf16.xpose.msra.mxu0 0
      %1029 = vmatprep.subr.bf16.mxu0 0
      %1030 = vmatpush1.bf16.xpose.msra.mxu0 0
      %1031 = vmatprep.subr.bf16.mxu0 0
      %1032 = vmatpush1.bf16.xpose.msra.mxu0 0
      %1033 = vmatprep.subr.bf16.mxu0 0
      %1034 = vmatpush1.bf16.xpose.msra.mxu0 0
      %1035 = vmatprep.subr.bf16.mxu0 0
      %1036 = vmatpush1.bf16.xpose.msra.mxu0 0
      %1037 = vmatprep.subr.bf16.mxu0 0
      %1038 = vmatpush1.bf16.xpose.msra.mxu0 0
      %1039 = vmatprep.subr.bf16.mxu0 0
      %1040 = vmatpush1.bf16.xpose.msra.mxu0 0
      %1041 = vmatprep.mubr.bf16.mxu0 0
      %1042 = vmatmul.mubr.bf16.gmra.mrb[0].mxu0 %v1004
      %v1043 = vpop.f32.mrb[0].mxu0
      %v1044 = vadd.f32 %v764, %v1043
      %v1045 = vpop.f32.mrb[0].mxu0
      %v1046 = vpop.f32.mrb[0].mxu0
      %v1047 = vpop.f32.mrb[0].mxu0
      %1048 = vdwg.mxu0
      %v1049 = vsel %vm769, %v1044, -inf
      %1050 = vmax.xlane.f32.xlu0 %v1049
      %v1051 = vpop.xlane.xlu0 %1050
      %v1052 = vsub.f32 %v1044, %v1051
      %v1053 = vmul.f32 %v1052, 1.442695
      %v1054 = vpow.pop %v1053
      %v1055 = vsel %vm769, %v1054, 0.0
      %1056 = vadd.xlane.f32.xlu0 %v1055
      %v1057 = vpop.xlane.xlu0 %1056
      %v1058 = vrcp.pop %v1057
      %v1059 = vmul.f32 %v1054, %v1058
      %v1060 = vpack.c.bf16 %v1059, %v1059
      %1061 = vrot.lane.b32.xlu0 %v759, 48
      %v1062 = vpop.permute.xlu0 %1061
      %v1064 = vsel %vm769, %v1060, 0
      %v1067 = vsel %vm833, %v1062, 0
      %1069 = vmatprep.subr.bf16.mxu0 0
      %1070 = vmatpush1.bf16.msra.mxu0 %v1067
      %1071 = vmatprep.subr.bf16.mxu0 0
      %1072 = vmatpush1.bf16.msra.mxu0 0
      %1073 = vmatprep.subr.bf16.mxu0 0
      %1074 = vmatpush1.bf16.msra.mxu0 0
      %1075 = vmatprep.subr.bf16.mxu0 0
      %1076 = vmatpush1.bf16.msra.mxu0 0
      %1077 = vmatprep.subr.bf16.mxu0 0
      %1078 = vmatpush1.bf16.msra.mxu0 0
      %1079 = vmatprep.subr.bf16.mxu0 0
      %1080 = vmatpush1.bf16.msra.mxu0 0
      %1081 = vmatprep.subr.bf16.mxu0 0
      %1082 = vmatpush1.bf16.msra.mxu0 0
      %1083 = vmatprep.subr.bf16.mxu0 0
      %1084 = vmatpush1.bf16.msra.mxu0 0
      %1085 = vmatprep.subr.bf16.mxu0 0
      %1086 = vmatpush1.bf16.msra.mxu0 0
      %1087 = vmatprep.subr.bf16.mxu0 0
      %1088 = vmatpush1.bf16.msra.mxu0 0
      %1089 = vmatprep.subr.bf16.mxu0 0
      %1090 = vmatpush1.bf16.msra.mxu0 0
      %1091 = vmatprep.subr.bf16.mxu0 0
      %1092 = vmatpush1.bf16.msra.mxu0 0
      %1093 = vmatprep.subr.bf16.mxu0 0
      %1094 = vmatpush1.bf16.msra.mxu0 0
      %1095 = vmatprep.subr.bf16.mxu0 0
      %1096 = vmatpush1.bf16.msra.mxu0 0
      %1097 = vmatprep.subr.bf16.mxu0 0
      %1098 = vmatpush1.bf16.msra.mxu0 0
      %1099 = vmatprep.subr.bf16.mxu0 0
      %1100 = vmatpush1.bf16.msra.mxu0 0
      %1101 = vmatprep.mubr.bf16.mxu0 0
      %1102 = vmatmul.mubr.bf16.gmra.mrb[0].mxu0 %v1064
      %v1103 = vpop.f32.mrb[0].mxu0
      %v1104 = vadd.f32 0.0, %v1103
      %v1105 = vpop.f32.mrb[0].mxu0
      %v1106 = vpop.f32.mrb[0].mxu0
      %v1107 = vpop.f32.mrb[0].mxu0
      %1108 = vdwg.mxu0
      %v1109 = vpack.c.bf16 %v1104, %v1104
      %v1111 = vunpack.c.l.b16 %v1109
      %v1112 = vpack.c.b16 %v1111, %v1111
      %1113 = vrot.lane.b32.xlu0 %v1112, 16
      %v1114 = vpop.permute.xlu0 %1113
      %vm1116 = vcmask 191616
      %1117 = vst.msk [vmem:[#allocation2] sm:$0xf] %vm1116, %v1114
      %1118 = vrot.lane.b32.xlu0 %v759, 104
      %v1119 = vpop.permute.xlu0 %1118
      %1120 = vrot.lane.b32.xlu0 %v759, 72
      %v1121 = vpop.permute.xlu0 %1120
      %v1123 = vsel %vm769, %v1119, 0
      %v1126 = vsel %vm769, %v1121, 0
      %1128 = vmatprep.subr.bf16.mxu0 0
      %1129 = vmatpush1.bf16.xpose.msra.mxu0 %v1126
      %1130 = vmatprep.subr.bf16.mxu0 0
      %1131 = vmatpush1.bf16.xpose.msra.mxu0 0
      %1132 = vmatprep.subr.bf16.mxu0 0
      %1133 = vmatpush1.bf16.xpose.msra.mxu0 0
      %1134 = vmatprep.subr.bf16.mxu0 0
      %1135 = vmatpush1.bf16.xpose.msra.mxu0 0
      %1136 = vmatprep.subr.bf16.mxu0 0
      %1137 = vmatpush1.bf16.xpose.msra.mxu0 0
      %1138 = vmatprep.subr.bf16.mxu0 0
      %1139 = vmatpush1.bf16.xpose.msra.mxu0 0
      %1140 = vmatprep.subr.bf16.mxu0 0
      %1141 = vmatpush1.bf16.xpose.msra.mxu0 0
      %1142 = vmatprep.subr.bf16.mxu0 0
      %1143 = vmatpush1.bf16.xpose.msra.mxu0 0
      %1144 = vmatprep.subr.bf16.mxu0 0
      %1145 = vmatpush1.bf16.xpose.msra.mxu0 0
      %1146 = vmatprep.subr.bf16.mxu0 0
      %1147 = vmatpush1.bf16.xpose.msra.mxu0 0
      %1148 = vmatprep.subr.bf16.mxu0 0
      %1149 = vmatpush1.bf16.xpose.msra.mxu0 0
      %1150 = vmatprep.subr.bf16.mxu0 0
      %1151 = vmatpush1.bf16.xpose.msra.mxu0 0
      %1152 = vmatprep.subr.bf16.mxu0 0
      %1153 = vmatpush1.bf16.xpose.msra.mxu0 0
      %1154 = vmatprep.subr.bf16.mxu0 0
      %1155 = vmatpush1.bf16.xpose.msra.mxu0 0
      %1156 = vmatprep.subr.bf16.mxu0 0
      %1157 = vmatpush1.bf16.xpose.msra.mxu0 0
      %1158 = vmatprep.subr.bf16.mxu0 0
      %1159 = vmatpush1.bf16.xpose.msra.mxu0 0
      %1160 = vmatprep.mubr.bf16.mxu0 0
      %1161 = vmatmul.mubr.bf16.gmra.mrb[0].mxu0 %v1123
      %v1162 = vpop.f32.mrb[0].mxu0
      %v1163 = vadd.f32 %v764, %v1162
      %v1164 = vpop.f32.mrb[0].mxu0
      %v1165 = vpop.f32.mrb[0].mxu0
      %v1166 = vpop.f32.mrb[0].mxu0
      %1167 = vdwg.mxu0
      %v1168 = vsel %vm769, %v1163, -inf
      %1169 = vmax.xlane.f32.xlu0 %v1168
      %v1170 = vpop.xlane.xlu0 %1169
      %v1171 = vsub.f32 %v1163, %v1170
      %v1172 = vmul.f32 %v1171, 1.442695
      %v1173 = vpow.pop %v1172
      %v1174 = vsel %vm769, %v1173, 0.0
      %1175 = vadd.xlane.f32.xlu0 %v1174
      %v1176 = vpop.xlane.xlu0 %1175
      %v1177 = vrcp.pop %v1176
      %v1178 = vmul.f32 %v1173, %v1177
      %v1179 = vpack.c.bf16 %v1178, %v1178
      %1180 = vrot.lane.b32.xlu0 %v759, 40
      %v1181 = vpop.permute.xlu0 %1180
      %v1183 = vsel %vm769, %v1179, 0
      %v1186 = vsel %vm833, %v1181, 0
      %1188 = vmatprep.subr.bf16.mxu0 0
      %1189 = vmatpush1.bf16.msra.mxu0 %v1186
      %1190 = vmatprep.subr.bf16.mxu0 0
      %1191 = vmatpush1.bf16.msra.mxu0 0
      %1192 = vmatprep.subr.bf16.mxu0 0
      %1193 = vmatpush1.bf16.msra.mxu0 0
      %1194 = vmatprep.subr.bf16.mxu0 0
      %1195 = vmatpush1.bf16.msra.mxu0 0
      %1196 = vmatprep.subr.bf16.mxu0 0
      %1197 = vmatpush1.bf16.msra.mxu0 0
      %1198 = vmatprep.subr.bf16.mxu0 0
      %1199 = vmatpush1.bf16.msra.mxu0 0
      %1200 = vmatprep.subr.bf16.mxu0 0
      %1201 = vmatpush1.bf16.msra.mxu0 0
      %1202 = vmatprep.subr.bf16.mxu0 0
      %1203 = vmatpush1.bf16.msra.mxu0 0
      %1204 = vmatprep.subr.bf16.mxu0 0
      %1205 = vmatpush1.bf16.msra.mxu0 0
      %1206 = vmatprep.subr.bf16.mxu0 0
      %1207 = vmatpush1.bf16.msra.mxu0 0
      %1208 = vmatprep.subr.bf16.mxu0 0
      %1209 = vmatpush1.bf16.msra.mxu0 0
      %1210 = vmatprep.subr.bf16.mxu0 0
      %1211 = vmatpush1.bf16.msra.mxu0 0
      %1212 = vmatprep.subr.bf16.mxu0 0
      %1213 = vmatpush1.bf16.msra.mxu0 0
      %1214 = vmatprep.subr.bf16.mxu0 0
      %1215 = vmatpush1.bf16.msra.mxu0 0
      %1216 = vmatprep.subr.bf16.mxu0 0
      %1217 = vmatpush1.bf16.msra.mxu0 0
      %1218 = vmatprep.subr.bf16.mxu0 0
      %1219 = vmatpush1.bf16.msra.mxu0 0
      %1220 = vmatprep.mubr.bf16.mxu0 0
      %1221 = vmatmul.mubr.bf16.gmra.mrb[0].mxu0 %v1183
      %v1222 = vpop.f32.mrb[0].mxu0
      %v1223 = vadd.f32 0.0, %v1222
      %v1224 = vpop.f32.mrb[0].mxu0
      %v1225 = vpop.f32.mrb[0].mxu0
      %v1226 = vpop.f32.mrb[0].mxu0
      %1227 = vdwg.mxu0
      %v1228 = vpack.c.bf16 %v1223, %v1223
      %v1230 = vunpack.c.l.b16 %v1228
      %v1231 = vpack.c.b16 %v1230, %v1230
      %1232 = vrot.lane.b32.xlu0 %v1231, 24
      %v1233 = vpop.permute.xlu0 %1232
      %vm1235 = vcmask 257216
      %1236 = vst.msk [vmem:[#allocation2] sm:$0xf] %vm1235, %v1233
      %v1237 = vld [vmem:[#allocation2] sm:$0xf]
      %v1238 = vld [vmem:[%s645] sm:$0xf]
      %v1239 = vld [vmem:[%s645 + $0x4] sm:$0xf]
      %v1240 = vld [vmem:[%s645 + $0x8] sm:$0xf]
      %v1241 = vld [vmem:[%s645 + $0xc] sm:$0xf]
      %v1242 = vld [vmem:[%s648] sm:$0x1]
      %v1244 = vlaneseq
      %v1245 = vshrl.u32 %v1244, 7
      %v1246 = vsub.s32 0, %v1245
      %v1247 = vrot.slane %v1242, %v1246
      %v1253 = vunpack.c.l.b16 %v1238
      %v1254 = vunpack.c.l.b16 %v1239
      %v1255 = vunpack.c.l.b16 %v1240
      %v1256 = vunpack.c.l.b16 %v1241
      %v1257 = vpack.c.b16 %v1254, %v1253
      %v1258 = vpack.c.b16 %v1256, %v1255
      %v1262 = vsel %vm715, %v1237, 0
      %1264 = vmatprep.subr.bf16.mxu0 0
      %1265 = vmatpush1.bf16.msra.mxu0 %v1257
      %1266 = vmatprep.subr.bf16.mxu0 0
      %1267 = vmatpush1.bf16.msra.mxu0 %v1258
      %1268 = vmatprep.subr.bf16.mxu0 0
      %1269 = vmatpush1.bf16.msra.mxu0 0
      %1270 = vmatprep.subr.bf16.mxu0 0
      %1271 = vmatpush1.bf16.msra.mxu0 0
      %1272 = vmatprep.subr.bf16.mxu0 0
      %1273 = vmatpush1.bf16.msra.mxu0 0
      %1274 = vmatprep.subr.bf16.mxu0 0
      %1275 = vmatpush1.bf16.msra.mxu0 0
      %1276 = vmatprep.subr.bf16.mxu0 0
      %1277 = vmatpush1.bf16.msra.mxu0 0
      %1278 = vmatprep.subr.bf16.mxu0 0
      %1279 = vmatpush1.bf16.msra.mxu0 0
      %1280 = vmatprep.subr.bf16.mxu0 0
      %1281 = vmatpush1.bf16.msra.mxu0 0
      %1282 = vmatprep.subr.bf16.mxu0 0
      %1283 = vmatpush1.bf16.msra.mxu0 0
      %1284 = vmatprep.subr.bf16.mxu0 0
      %1285 = vmatpush1.bf16.msra.mxu0 0
      %1286 = vmatprep.subr.bf16.mxu0 0
      %1287 = vmatpush1.bf16.msra.mxu0 0
      %1288 = vmatprep.subr.bf16.mxu0 0
      %1289 = vmatpush1.bf16.msra.mxu0 0
      %1290 = vmatprep.subr.bf16.mxu0 0
      %1291 = vmatpush1.bf16.msra.mxu0 0
      %1292 = vmatprep.subr.bf16.mxu0 0
      %1293 = vmatpush1.bf16.msra.mxu0 0
      %1294 = vmatprep.subr.bf16.mxu0 0
      %1295 = vmatpush1.bf16.msra.mxu0 0
      %1296 = vmatprep.mubr.bf16.mxu0 0
      %1297 = vmatmul.mubr.bf16.gmra.mrb[0].mxu0 %v1262
      %v1298 = vpop.f32.mrb[0].mxu0
      %v1299 = vadd.f32 %v1247, %v1298
      %v1300 = vpop.f32.mrb[0].mxu0
      %v1301 = vpop.f32.mrb[0].mxu0
      %v1302 = vpop.f32.mrb[0].mxu0
      %1303 = vdwg.mxu0
      %v1304 = vadd.f32 %v689, %v1299
      %v1305 = vld [vmem:[%s651] sm:$0x1]
      %v1306 = vld [vmem:[%s654] sm:$0x1]
      %v1307 = vsel %vm715, %v1304, 0.0
      %1308 = vadd.xlane.f32.xlu0 %v1307
      %v1309 = vpop.xlane.xlu0 %1308
      %v1310 = vrcp.pop 32.0
      %v1311 = vmul.f32 %v1309, %v1310
      %v1312 = vsub.f32 %v1304, %v1311
      %v1313 = vmul.f32 %v1312, %v1312
      %v1314 = vsel %vm715, %v1313, 0.0
      %1315 = vadd.xlane.f32.xlu0 %v1314
      %v1316 = vpop.xlane.xlu0 %1315
      %v1317 = vmul.f32 %v1316, %v1310
      %v1318 = vadd.f32 %v1317, 1e-05
      %v1319 = vrsqrt.pop %v1318
      %v1320 = vmul.f32 %v1312, %v1319
      %v1322 = vlaneseq
      %v1323 = vshrl.u32 %v1322, 7
      %v1324 = vsub.s32 0, %v1323
      %v1325 = vrot.slane %v1305, %v1324
      %v1327 = vmul.f32 %v1320, %v1325
      %v1329 = vlaneseq
      %v1330 = vshrl.u32 %v1329, 7
      %v1331 = vsub.s32 0, %v1330
      %v1332 = vrot.slane %v1306, %v1331
      %v1334 = vadd.f32 %v1327, %v1332
      %v1335 = vpack.c.bf16 %v1334, %v1334
      %v1336 = vld [vmem:[%s659] sm:$0xf]
      %v1337 = vld [vmem:[%s659 + $0x4] sm:$0xf]
      %v1338 = vld [vmem:[%s659 + $0x8] sm:$0xf]
      %v1339 = vld [vmem:[%s659 + $0xc] sm:$0xf]
      %v1340 = vld [vmem:[%s662] sm:$0x1]
      %v1342 = vlaneseq
      %v1343 = vshrl.u32 %v1342, 7
      %v1344 = vsub.s32 0, %v1343
      %v1345 = vrot.slane %v1340, %v1344
      %v1351 = vunpack.c.l.b16 %v1336
      %v1352 = vunpack.c.l.b16 %v1337
      %v1353 = vunpack.c.l.b16 %v1338
      %v1354 = vunpack.c.l.b16 %v1339
      %v1355 = vpack.c.b16 %v1352, %v1351
      %v1356 = vpack.c.b16 %v1354, %v1353
      %v1360 = vsel %vm715, %v1335, 0
      %1362 = vmatprep.subr.bf16.mxu0 0
      %1363 = vmatpush1.bf16.msra.mxu0 %v1355
      %1364 = vmatprep.subr.bf16.mxu0 0
      %1365 = vmatpush1.bf16.msra.mxu0 %v1356
      %1366 = vmatprep.subr.bf16.mxu0 0
      %1367 = vmatpush1.bf16.msra.mxu0 0
      %1368 = vmatprep.subr.bf16.mxu0 0
      %1369 = vmatpush1.bf16.msra.mxu0 0
      %1370 = vmatprep.subr.bf16.mxu0 0
      %1371 = vmatpush1.bf16.msra.mxu0 0
      %1372 = vmatprep.subr.bf16.mxu0 0
      %1373 = vmatpush1.bf16.msra.mxu0 0
      %1374 = vmatprep.subr.bf16.mxu0 0
      %1375 = vmatpush1.bf16.msra.mxu0 0
      %1376 = vmatprep.subr.bf16.mxu0 0
      %1377 = vmatpush1.bf16.msra.mxu0 0
      %1378 = vmatprep.subr.bf16.mxu0 0
      %1379 = vmatpush1.bf16.msra.mxu0 0
      %1380 = vmatprep.subr.bf16.mxu0 0
      %1381 = vmatpush1.bf16.msra.mxu0 0
      %1382 = vmatprep.subr.bf16.mxu0 0
      %1383 = vmatpush1.bf16.msra.mxu0 0
      %1384 = vmatprep.subr.bf16.mxu0 0
      %1385 = vmatpush1.bf16.msra.mxu0 0
      %1386 = vmatprep.subr.bf16.mxu0 0
      %1387 = vmatpush1.bf16.msra.mxu0 0
      %1388 = vmatprep.subr.bf16.mxu0 0
      %1389 = vmatpush1.bf16.msra.mxu0 0
      %1390 = vmatprep.subr.bf16.mxu0 0
      %1391 = vmatpush1.bf16.msra.mxu0 0
      %1392 = vmatprep.subr.bf16.mxu0 0
      %1393 = vmatpush1.bf16.msra.mxu0 0
      %1394 = vmatprep.mubr.bf16.mxu0 0
      %1395 = vmatmul.mubr.bf16.gmra.mrb[0].mxu0 %v1360
      %v1396 = vpop.f32.mrb[0].mxu0
      %v1397 = vadd.f32 %v1345, %v1396
      %v1398 = vpop.f32.mrb[0].mxu0
      %v1399 = vpop.f32.mrb[0].mxu0
      %v1400 = vpop.f32.mrb[0].mxu0
      %1401 = vdwg.mxu0
      %v1402 = vmul.f32 %v1397, 0.5
      %v1403 = vmul.f32 %v1397, 0.044715
      %v1404 = vmul.f32 %v1403, %v1397
      %v1405 = vmul.f32 %v1404, %v1397
      %v1406 = vadd.f32 %v1397, %v1405
      %v1407 = vmul.f32 %v1406, 0.7978846
      %v1408 = vtanh.pop %v1407
      %v1409 = vadd.f32 %v1408, 1.0
      %v1410 = vmul.f32 %v1402, %v1409
      %v1411 = vpack.c.bf16 %v1410, %v1410
      %v1412 = vld [vmem:[%s667] sm:$0xf]
      %v1413 = vld [vmem:[%s667 + $0x4] sm:$0xf]
      %v1414 = vld [vmem:[%s667 + $0x8] sm:$0xf]
      %v1415 = vld [vmem:[%s667 + $0xc] sm:$0xf]
      %v1416 = vld [vmem:[%s667 + $0x10] sm:$0xf]
      %v1417 = vld [vmem:[%s667 + $0x14] sm:$0xf]
      %v1418 = vld [vmem:[%s667 + $0x18] sm:$0xf]
      %v1419 = vld [vmem:[%s667 + $0x1c] sm:$0xf]
      %v1420 = vld [vmem:[%s667 + $0x20] sm:$0xf]
      %v1421 = vld [vmem:[%s667 + $0x24] sm:$0xf]
      %v1422 = vld [vmem:[%s667 + $0x28] sm:$0xf]
      %v1423 = vld [vmem:[%s667 + $0x2c] sm:$0xf]
      %v1424 = vld [vmem:[%s667 + $0x30] sm:$0xf]
      %v1425 = vld [vmem:[%s667 + $0x34] sm:$0xf]
      %v1426 = vld [vmem:[%s667 + $0x38] sm:$0xf]
      %v1427 = vld [vmem:[%s667 + $0x3c] sm:$0xf]
      %v1428 = vld [vmem:[%s670] sm:$0x1]
      %v1430 = vlaneseq
      %v1431 = vshrl.u32 %v1430, 7
      %v1432 = vsub.s32 0, %v1431
      %v1433 = vrot.slane %v1428, %v1432
      %v1451 = vunpack.c.l.b16 %v1412
      %v1452 = vunpack.c.l.b16 %v1413
      %v1453 = vunpack.c.l.b16 %v1414
      %v1454 = vunpack.c.l.b16 %v1415
      %v1455 = vunpack.c.l.b16 %v1416
      %v1456 = vunpack.c.l.b16 %v1417
      %v1457 = vunpack.c.l.b16 %v1418
      %v1458 = vunpack.c.l.b16 %v1419
      %v1459 = vunpack.c.l.b16 %v1420
      %v1460 = vunpack.c.l.b16 %v1421
      %v1461 = vunpack.c.l.b16 %v1422
      %v1462 = vunpack.c.l.b16 %v1423
      %v1463 = vunpack.c.l.b16 %v1424
      %v1464 = vunpack.c.l.b16 %v1425
      %v1465 = vunpack.c.l.b16 %v1426
      %v1466 = vunpack.c.l.b16 %v1427
      %v1467 = vpack.c.b16 %v1452, %v1451
      %v1468 = vpack.c.b16 %v1454, %v1453
      %v1469 = vpack.c.b16 %v1456, %v1455
      %v1470 = vpack.c.b16 %v1458, %v1457
      %v1471 = vpack.c.b16 %v1460, %v1459
      %v1472 = vpack.c.b16 %v1462, %v1461
      %v1473 = vpack.c.b16 %v1464, %v1463
      %v1474 = vpack.c.b16 %v1466, %v1465
      %1483 = vmatprep.subr.bf16.mxu0 0
      %1484 = vmatpush1.bf16.msra.mxu0 %v1467
      %1485 = vmatprep.subr.bf16.mxu0 0
      %1486 = vmatpush1.bf16.msra.mxu0 %v1468
      %1487 = vmatprep.subr.bf16.mxu0 0
      %1488 = vmatpush1.bf16.msra.mxu0 %v1469
      %1489 = vmatprep.subr.bf16.mxu0 0
      %1490 = vmatpush1.bf16.msra.mxu0 %v1470
      %1491 = vmatprep.subr.bf16.mxu0 0
      %1492 = vmatpush1.bf16.msra.mxu0 %v1471
      %1493 = vmatprep.subr.bf16.mxu0 0
      %1494 = vmatpush1.bf16.msra.mxu0 %v1472
      %1495 = vmatprep.subr.bf16.mxu0 0
      %1496 = vmatpush1.bf16.msra.mxu0 %v1473
      %1497 = vmatprep.subr.bf16.mxu0 0
      %1498 = vmatpush1.bf16.msra.mxu0 %v1474
      %1499 = vmatprep.subr.bf16.mxu0 0
      %1500 = vmatpush1.bf16.msra.mxu0 0
      %1501 = vmatprep.subr.bf16.mxu0 0
      %1502 = vmatpush1.bf16.msra.mxu0 0
      %1503 = vmatprep.subr.bf16.mxu0 0
      %1504 = vmatpush1.bf16.msra.mxu0 0
      %1505 = vmatprep.subr.bf16.mxu0 0
      %1506 = vmatpush1.bf16.msra.mxu0 0
      %1507 = vmatprep.subr.bf16.mxu0 0
      %1508 = vmatpush1.bf16.msra.mxu0 0
      %1509 = vmatprep.subr.bf16.mxu0 0
      %1510 = vmatpush1.bf16.msra.mxu0 0
      %1511 = vmatprep.subr.bf16.mxu0 0
      %1512 = vmatpush1.bf16.msra.mxu0 0
      %1513 = vmatprep.subr.bf16.mxu0 0
      %1514 = vmatpush1.bf16.msra.mxu0 0
      %1515 = vmatprep.mubr.bf16.mxu0 0
      %1516 = vmatmul.mubr.bf16.gmra.mrb[0].mxu0 %v1411
      %v1517 = vpop.f32.mrb[0].mxu0
      %v1518 = vadd.f32 %v1433, %v1517
      %v1519 = vpop.f32.mrb[0].mxu0
      %v1520 = vpop.f32.mrb[0].mxu0
      %v1521 = vpop.f32.mrb[0].mxu0
      %1522 = vdwg.mxu0
      %v1523 = vadd.f32 %v1518, %v1334
      %v1524 = vld [vmem:[%s673] sm:$0x1]
      %v1525 = vld [vmem:[%s676] sm:$0x1]
      %v1526 = vsel %vm715, %v1523, 0.0
      %1527 = vadd.xlane.f32.xlu0 %v1526
      %v1528 = vpop.xlane.xlu0 %1527
      %v1529 = vmul.f32 %v1528, %v1310
      %v1530 = vsub.f32 %v1523, %v1529
      %v1531 = vmul.f32 %v1530, %v1530
      %v1532 = vsel %vm715, %v1531, 0.0
      %1533 = vadd.xlane.f32.xlu0 %v1532
      %v1534 = vpop.xlane.xlu0 %1533
      %v1535 = vmul.f32 %v1534, %v1310
      %v1536 = vadd.f32 %v1535, 1e-05
      %v1537 = vrsqrt.pop %v1536
      %v1538 = vmul.f32 %v1530, %v1537
      %v1540 = vlaneseq
      %v1541 = vshrl.u32 %v1540, 7
      %v1542 = vsub.s32 0, %v1541
      %v1543 = vrot.slane %v1524, %v1542
      %v1545 = vmul.f32 %v1538, %v1543
      %v1547 = vlaneseq
      %v1548 = vshrl.u32 %v1547, 7
      %v1549 = vsub.s32 0, %v1548
      %v1550 = vrot.slane %v1525, %v1549
      %v1552 = vadd.f32 %v1545, %v1550
      %1553 = vst.msk [vmem:[%s680] sm:$0xff] %vm715, %v1552
      %p1554 = scmp.lt.s32.totalorder %s29, 1
      %s1555 = scalar_select %p1554, %s29, 1
      %s1556 = smul.addr %s1555, 8
      %s1557 = scalar_lea.vmem %s14, %s1556
      // Predicated region
      $region81: #{roberta_encoder_forward.1} parent=75 // pred_check
        %p1558 = pneg %p419
      $region82: #{roberta_encoder_forward.1} parent=75 // pred_check_branch
        %1560 = sbr.rel (%p1558) target = $region84
      $region83: #{roberta_encoder_forward.1} parent=75 // pred_region
        _
      $region84: #{roberta_encoder_forward.1} parent=75 // pred_fallthru
        _
    $region76: #{roberta_encoder_forward.1} parent=5 // pred_fallthru
      _
    %p1561 = scmp.le.s32.totalorder 2, %s20
    // Predicated region
    $region85: #{roberta_encoder_forward.1} parent=5 // pred_check
      %p1562 = pneg %p1561
    $region86: #{roberta_encoder_forward.1} parent=5 // pred_check_branch
      %1564 = sbr.rel (%p1562) target = $region88
    $region87: #{roberta_encoder_forward.1} parent=5 // pred_region
      %s1565 = ssub.s32 %s20, 2
      // Predicated region
      $region89: #{roberta_encoder_forward.1} parent=87 // pred_check
        %p1566 = pneg %p425
      $region90: #{roberta_encoder_forward.1} parent=87 // pred_check_branch
        %1568 = sbr.rel (%p1566) target = $region92
      $region91: #{roberta_encoder_forward.1} parent=87 // pred_region
        %p1569 = scmp.lt.s32.totalorder %s31, 1
        %s1570 = scalar_select %p1569, %s31, 1
        %s1571 = smul.addr %s1570, 8
        %s1572 = scalar_lea.vmem %s14, %s1571
      $region92: #{roberta_encoder_forward.1} parent=87 // pred_fallthru
        _
    $region88: #{roberta_encoder_forward.1} parent=5 // pred_fallthru
      _
  $region6: #{roberta_encoder_forward.1} parent=0 // loop_footer
    %s24 = sadd.s32 1, %s20
  $region7: #{roberta_encoder_forward.1} parent=0 // loop_footer_branch
    %19 = sbr.rel target = $region3
  $region8: #{roberta_encoder_forward.1} parent=0 // loop_exit
    _

</llo_original>
